<compile_context>
chip_gen: v7x
topology: tpu7x:2x2x1
jax: 0.10.0
libtpu: 0.0.40
codegen_flags: <defaults>
</compile_context>

<pallas_src>
import functools

import jax
import jax.numpy as jnp
from jax.experimental import pallas as pl
from jax.experimental.pallas import tpu as pltpu

_BN_EPS = 1e-5
_PALLAS_MIN_R = 128          # below this, launch overhead > op: use plain XLA


def _round_up(x, m):
    return (x + m - 1) // m * m


def _tpu_vmem_limit():
    """Generation-aware scoped-VMEM limit (v7x: 64 MiB, v5e/v6e: 128 MiB)."""
    try:
        cap = int(getattr(pltpu.get_tpu_info(), "vmem_capacity_bytes", 64 << 20))
    except Exception:
        cap = 64 << 20
    return min(cap * 3 // 4, 96 << 20)


VMEM_LIMIT = _tpu_vmem_limit()
_VMEM_TILE_BUDGET = VMEM_LIMIT // 2   # per-step double-buffered working set


def _plan_rows(r, bytes_per_row):
    """Pick (padded_R, tile_rows): lane axis 128-aligned, VMEM-budgeted, and
    as large as possible (minimize grid-step overhead on single-TC chips)."""
    if r <= 128:
        return r, r                                    # single full-extent block
    cap = max(128, (_VMEM_TILE_BUDGET // max(bytes_per_row, 1)) // 128 * 128)
    tr = min(cap, _round_up(r, 128))
    rp = _round_up(r, tr)
    return rp, tr


# ----------------------------- Pallas kernels -----------------------------

def _conv_lrelu_kernel(w_ref, x_ref, o_ref):
    """(OC, K) @ (K, TR) on the MXU; fused LeakyReLU(0.2); bf16 output."""
    y = jnp.dot(w_ref[...], x_ref[...], preferred_element_type=jnp.float32)
    o_ref[...] = jnp.where(y > 0, y, 0.2 * y).astype(o_ref.dtype)


def _conv_bn_lrelu_kernel(w_ref, x_ref, g_ref, b_ref, o_ref,
                          y_acc, sum_ref, ssq_ref, *, r_valid, eps):
    """Conv matmul + fused training-mode BatchNorm + LeakyReLU(0.2).

    Per-channel sum / sum-of-squares accumulate across grid steps; the f32
    conv result is kept resident in `y_acc`; the folded scale/shift + act is
    applied on the last step and written as bf16.  Zero-padded lane columns
    contribute exactly 0 to the sums (bias-free conv), so dividing by the
    valid row count keeps the statistics exact.
    """
    i = pl.program_id(0)
    nsteps = pl.num_programs(0)
    tr = x_ref.shape[-1]
    rp = o_ref.shape[-1]
    oc = o_ref.shape[0]
    chunk = 512                               # bounds vreg live ranges

    @pl.when(i == 0)
    def _():
        sum_ref[...] = jnp.zeros_like(sum_ref)
        ssq_ref[...] = jnp.zeros_like(ssq_ref)

    y = jnp.dot(w_ref[...], x_ref[...], preferred_element_type=jnp.float32)
    off = pl.multiple_of(i * tr, 128)
    y_acc[:, pl.ds(off, tr)] = y

    csum = jnp.zeros((oc, 1), jnp.float32)
    cssq = jnp.zeros((oc, 1), jnp.float32)
    for c0 in range(0, tr, chunk):
        cw = min(chunk, tr - c0)
        yc = y[:, c0:c0 + cw]
        csum = csum + jnp.sum(yc, axis=1, keepdims=True)
        cssq = cssq + jnp.sum(yc * yc, axis=1, keepdims=True)
    sum_ref[...] += csum
    ssq_ref[...] += cssq

    @pl.when(i == nsteps - 1)
    def _():
        inv_r = 1.0 / r_valid
        mean = sum_ref[...] * inv_r
        var = jnp.maximum(ssq_ref[...] * inv_r - mean * mean, 0.0)   # clamp >= 0
        scale = g_ref[...] * jax.lax.rsqrt(var + eps)
        shift = b_ref[...] - mean * scale
        for c0 in range(0, rp, chunk):
            cw = min(chunk, rp - c0)
            z = y_acc[:, c0:c0 + cw] * scale + shift
            o_ref[:, c0:c0 + cw] = jnp.where(z > 0, z, 0.2 * z).astype(o_ref.dtype)


# ------------------------------ glue helpers -------------------------------

def _im2col_cm(x, kh, kw, stride, pad):
    """x: (C, N, H, W) channel-major -> colsT (C*kh*kw, N*OH*OW), plus OH, OW."""
    c, n, h, w = x.shape
    xp = jnp.pad(x, ((0, 0), (0, 0), (pad, pad), (pad, pad)))
    oh = (h + 2 * pad - kh) // stride + 1
    ow = (w + 2 * pad - kw) // stride + 1
    cols = []
    for i in range(kh):
        for j in range(kw):
            cols.append(xp[:, :, i:i + stride * oh:stride, j:j + stride * ow:stride])
    cols = jnp.stack(cols, axis=1)                 # (C, kh*kw, N, OH, OW)
    cols = cols.reshape(c * kh * kw, n * oh * ow)  # row index = c*kh*kw + i*kw + j
    return cols, oh, ow


def _out_hw(h, w, kh, kw, stride, pad):
    return (h + 2 * pad - kh) // stride + 1, (w + 2 * pad - kw) // stride + 1


def _conv_lrelu(x_cm, w, *, stride, pad):
    """Conv2d(bias=False) + LeakyReLU(0.2); channel-major (C,N,H,W) bf16 io."""
    n = x_cm.shape[1]
    oc, _, kh, kw = w.shape
    oh, ow = _out_hw(x_cm.shape[2], x_cm.shape[3], kh, kw, stride, pad)
    r = n * oh * ow

    cols, oh, ow = _im2col_cm(x_cm, kh, kw, stride, pad)   # bf16 (K, R)
    k = cols.shape[0]
    cols = cols.astype(jnp.bfloat16)
    wmat = w.reshape(oc, k).astype(jnp.bfloat16)

    if r < _PALLAS_MIN_R:                                   # tiny tail -> XLA
        y = jnp.dot(wmat, cols, preferred_element_type=jnp.float32)
        y = jnp.where(y > 0, y, 0.2 * y).astype(jnp.bfloat16)
        return y.reshape(oc, n, oh, ow)

    bytes_per_row = 2 * k * 2 + oc * 4 + oc * 2             # dbl-buf cols + y + out
    rp, tr = _plan_rows(r, bytes_per_row)
    if rp > r:
        cols = jnp.pad(cols, ((0, 0), (0, rp - r)))

    out = pl.pallas_call(
        _conv_lrelu_kernel,
        out_shape=jax.ShapeDtypeStruct((oc, rp), jnp.bfloat16),
        grid=(rp // tr,),
        in_specs=[pl.BlockSpec((oc, k), lambda i: (0, 0)),
                  pl.BlockSpec((k, tr), lambda i: (0, i))],
        out_specs=pl.BlockSpec((oc, tr), lambda i: (0, i)),
        compiler_params=pltpu.CompilerParams(
            dimension_semantics=("parallel",),
            vmem_limit_bytes=VMEM_LIMIT,
            allow_input_fusion=[False, True]),     # fuse im2col producers into DMA
    )(wmat, cols)
    return out[:, :r].reshape(oc, n, oh, ow)


def _conv_bn_lrelu(x_cm, w, gamma, beta, *, stride, pad):
    """Conv2d(bias=False) + BatchNorm2d (batch stats) + LeakyReLU(0.2)."""
    n = x_cm.shape[1]
    oc, _, kh, kw = w.shape
    oh, ow = _out_hw(x_cm.shape[2], x_cm.shape[3], kh, kw, stride, pad)
    r = n * oh * ow

    cols, oh, ow = _im2col_cm(x_cm, kh, kw, stride, pad)    # bf16 (K, R)
    k = cols.shape[0]
    cols = cols.astype(jnp.bfloat16)
    wmat = w.reshape(oc, k).astype(jnp.bfloat16)
    g = gamma.reshape(oc, 1).astype(jnp.float32)
    b = beta.reshape(oc, 1).astype(jnp.float32)

    if r < _PALLAS_MIN_R:                                   # tiny tail -> XLA
        y = jnp.dot(wmat, cols, preferred_element_type=jnp.float32)
        mean = jnp.mean(y, axis=1, keepdims=True)
        var = jnp.maximum(jnp.mean(y * y, axis=1, keepdims=True) - mean * mean, 0.0)
        scale = g * jax.lax.rsqrt(var + _BN_EPS)
        z = y * scale + (b - mean * scale)
        z = jnp.where(z > 0, z, 0.2 * z).astype(jnp.bfloat16)
        return z.reshape(oc, n, oh, ow)

    bytes_per_row = 2 * k * 2 + oc * 4 + oc * 4 + oc * 2    # cols + y + y_acc + out
    rp, tr = _plan_rows(r, bytes_per_row)
    if rp > r:
        cols = jnp.pad(cols, ((0, 0), (0, rp - r)))         # zero cols -> zero y

    kernel = functools.partial(_conv_bn_lrelu_kernel, r_valid=float(r), eps=_BN_EPS)
    out = pl.pallas_call(
        kernel,
        out_shape=jax.ShapeDtypeStruct((oc, rp), jnp.bfloat16),
        grid=(rp // tr,),
        in_specs=[pl.BlockSpec((oc, k), lambda i: (0, 0)),
                  pl.BlockSpec((k, tr), lambda i: (0, i)),
                  pl.BlockSpec((oc, 1), lambda i: (0, 0)),
                  pl.BlockSpec((oc, 1), lambda i: (0, 0))],
        out_specs=pl.BlockSpec((oc, rp), lambda i: (0, 0)),   # resident across steps
        scratch_shapes=[pltpu.VMEM((oc, rp), jnp.float32),    # conv result (f32)
                        pltpu.VMEM((oc, 1), jnp.float32),     # per-channel sum
                        pltpu.VMEM((oc, 1), jnp.float32)],    # per-channel sum-sq
        compiler_params=pltpu.CompilerParams(
            dimension_semantics=("arbitrary",),   # stats accumulate over row tiles
            vmem_limit_bytes=VMEM_LIMIT,
            allow_input_fusion=[False, True, False, False]),
    )(wmat, cols, g, b)
    # TODO(synk): for very large R on v7x, emit per-core partial sums so the
    # stats convs can run "parallel" across both TensorCores.
    return out[:, :r].reshape(oc, n, oh, ow)


# ------------------------------- the model ---------------------------------

def init_params(key, nc, ndf):
    """Deterministic synthetic params, DCGAN-style init (conv ~ N(0, 0.02))."""
    ks = jax.random.split(key, 8)

    def conv_w(k, oc, ic):
        return 0.02 * jax.random.normal(k, (oc, ic, 4, 4), jnp.float32)

    return {
        "conv1": conv_w(ks[0], ndf, nc),
        "conv2": conv_w(ks[1], ndf * 2, ndf),
        "conv3": conv_w(ks[2], ndf * 4, ndf * 2),
        "conv4": conv_w(ks[3], ndf * 8, ndf * 4),
        "conv5": conv_w(ks[4], 1, ndf * 8),
        "bn2_gamma": 1.0 + 0.02 * jax.random.normal(ks[5], (ndf * 2,), jnp.float32),
        "bn3_gamma": 1.0 + 0.02 * jax.random.normal(ks[6], (ndf * 4,), jnp.float32),
        "bn4_gamma": 1.0 + 0.02 * jax.random.normal(ks[7], (ndf * 8,), jnp.float32),
        "bn2_beta": jnp.zeros((ndf * 2,), jnp.float32),
        "bn3_beta": jnp.zeros((ndf * 4,), jnp.float32),
        "bn4_beta": jnp.zeros((ndf * 8,), jnp.float32),
    }


@jax.jit
def discriminator_forward(x_nchw, params):
    n = x_nchw.shape[0]
    # Channel-major, bf16 internal layout; convert only at the model boundary.
    x = jnp.transpose(x_nchw, (1, 0, 2, 3)).astype(jnp.bfloat16)   # (C, N, H, W)

    # Conv(nc->ndf, 4, 2, 1) + LeakyReLU(0.2), fused in one Pallas kernel.
    x = _conv_lrelu(x, params["conv1"], stride=2, pad=1)

    # Conv + BatchNorm(batch stats) + LeakyReLU, fully fused per layer.
    for cname, gname, bname in (("conv2", "bn2_gamma", "bn2_beta"),
                                ("conv3", "bn3_gamma", "bn3_beta"),
                                ("conv4", "bn4_gamma", "bn4_beta")):
        x = _conv_bn_lrelu(x, params[cname], params[gname], params[bname],
                           stride=2, pad=1)

    # Conv(8ndf->1, 4, 1, 0) + Sigmoid: R = N, OC = 1 -> plain XLA (launch
    # overhead would exceed the op).
    cols5, oh5, ow5 = _im2col_cm(x, 4, 4, 1, 0)                    # (K, N)
    w5 = params["conv5"].reshape(1, -1).astype(jnp.bfloat16)
    logits = jnp.dot(w5, cols5.astype(jnp.bfloat16),
                     preferred_element_type=jnp.float32)
    out = jax.nn.sigmoid(logits)
    return out.reshape(1, n, oh5, ow5).transpose(1, 0, 2, 3)       # (N, 1, 1, 1)


if __name__ == "__main__":
    key = jax.random.PRNGKey(0)
    k_x, k_p = jax.random.split(key)

    # DCGAN discriminator needs a 64x64 input to end at 1x1; keep channels
    # small (nc=3, ndf=8) and batch=2.
    N, NC, NDF = 2, 3, 8
    x = jax.random.normal(k_x, (N, NC, 64, 64), jnp.float32)
    params = init_params(k_p, NC, NDF)

    out = discriminator_forward(x, params)
    out = jax.block_until_ready(out)

    assert out.shape == (N, 1, 1, 1), out.shape
    assert bool(jnp.all((out >= 0.0) & (out <= 1.0)))
    print("KERNEL_OK")
</pallas_src>

<mosaic_0001>
module attributes {stable_mosaic.version = 11 : i64} {
  func.func @_conv_lrelu_kernel(%arg0: i32, %arg1: memref<8x48xbf16, #tpu.memory_space<vmem>>, %arg2: memref<48x2048xbf16, #tpu.memory_space<vmem>>, %arg3: memref<8x2048xbf16, #tpu.memory_space<vmem>>) attributes {dimension_semantics = [#tpu.dimension_semantics<parallel>], iteration_bounds = array<i64: 1>, scalar_prefetch = 0 : i64, scratch_operands = 0 : i64, tpu.core_type = #tpu.core_type<tc>, window_params = [{pipeline_mode = #tpu.pipeline_mode<synchronous>, transform_indices = @transform_0, window_bounds = array<i64: 8, 48>}, {transform_indices = @transform_1, window_bounds = array<i64: 48, 2048>}, {transform_indices = @transform_2, window_bounds = array<i64: 8, 2048>}]} {
    %c0 = arith.constant 0 : index
    %c0_0 = arith.constant 0 : index
    %0 = vector.load %arg1[%c0, %c0_0] : memref<8x48xbf16, #tpu.memory_space<vmem>>, vector<8x48xbf16>
    %c0_1 = arith.constant 0 : index
    %c0_2 = arith.constant 0 : index
    %1 = vector.load %arg2[%c0_1, %c0_2] : memref<48x2048xbf16, #tpu.memory_space<vmem>>, vector<48x2048xbf16>
    %cst = arith.constant dense<0.000000e+00> : vector<8x2048xf32>
    %2 = tpu.matmul %0, %1, %cst {dimension_numbers = #tpu.dot_dimension_numbers<[1], [0], [0], [1], [0, 0, 1, 1], [], []>} : vector<8x48xbf16>, vector<48x2048xbf16>, vector<8x2048xf32> -> vector<8x2048xf32>
    %cst_3 = arith.constant 0.000000e+00 : f32
    %3 = vector.broadcast %cst_3 : f32 to vector<8x2048xf32>
    %4 = arith.cmpf ogt, %2, %3 : vector<8x2048xf32>
    %cst_4 = arith.constant 2.000000e-01 : f32
    %5 = vector.broadcast %cst_4 : f32 to vector<8x2048xf32>
    %6 = arith.mulf %5, %2 : vector<8x2048xf32>
    %7 = arith.select %4, %2, %6 : vector<8x2048xi1>, vector<8x2048xf32>
    %8 = arith.truncf %7 : vector<8x2048xf32> to vector<8x2048xbf16>
    %c0_5 = arith.constant 0 : index
    %c0_6 = arith.constant 0 : index
    %9 = vector.load %arg3[%c0_5, %c0_6] : memref<8x2048xbf16, #tpu.memory_space<vmem>>, vector<8x2048xbf16>
    tpu.vector_store %arg3[%c0_5, %c0_6], %8 {strides = array<i32>} : memref<8x2048xbf16, #tpu.memory_space<vmem>>, vector<8x2048xbf16>,
    return
  }
  func.func @transform_0(%arg0: i32) -> (i32, i32) {
    %c0_i32 = arith.constant 0 : i32
    %c0_i32_0 = arith.constant 0 : i32
    %c0_i32_1 = arith.constant 0 : i32
    return %c0_i32, %c0_i32_0 : i32, i32
  }
  func.func @transform_1(%arg0: i32) -> (i32, i32) {
    %c0_i32 = arith.constant 0 : i32
    %c0_i32_0 = arith.constant 0 : i32
    return %c0_i32, %arg0 : i32, i32
  }
  func.func @transform_2(%arg0: i32) -> (i32, i32) {
    %c0_i32 = arith.constant 0 : i32
    %c0_i32_0 = arith.constant 0 : i32
    return %c0_i32, %arg0 : i32, i32
  }
}

module attributes {stable_mosaic.version = 11 : i64} {
  func.func @_conv_bn_lrelu_kernel(%arg0: i32, %arg1: memref<16x128xbf16, #tpu.memory_space<vmem>>, %arg2: memref<128x512xbf16, #tpu.memory_space<vmem>>, %arg3: memref<16x1xf32, #tpu.memory_space<vmem>>, %arg4: memref<16x1xf32, #tpu.memory_space<vmem>>, %arg5: memref<16x512xbf16, #tpu.memory_space<vmem>>, %arg6: memref<16x512xf32, #tpu.memory_space<vmem>>, %arg7: memref<16x1xf32, #tpu.memory_space<vmem>>, %arg8: memref<16x1xf32, #tpu.memory_space<vmem>>) attributes {dimension_semantics = [#tpu.dimension_semantics<arbitrary>], iteration_bounds = array<i64: 1>, scalar_prefetch = 0 : i64, scratch_operands = 3 : i64, tpu.core_type = #tpu.core_type<tc>, window_params = [{pipeline_mode = #tpu.pipeline_mode<synchronous>, transform_indices = @transform_0, window_bounds = array<i64: 16, 128>}, {transform_indices = @transform_1, window_bounds = array<i64: 128, 512>}, {pipeline_mode = #tpu.pipeline_mode<synchronous>, transform_indices = @transform_2, window_bounds = array<i64: 16, 1>}, {pipeline_mode = #tpu.pipeline_mode<synchronous>, transform_indices = @transform_3, window_bounds = array<i64: 16, 1>}, {pipeline_mode = #tpu.pipeline_mode<synchronous>, transform_indices = @transform_4, window_bounds = array<i64: 16, 512>}]} {
    %c0_i32 = arith.constant 0 : i32
    %0 = arith.cmpi eq, %arg0, %c0_i32 : i32
    %1 = arith.extui %0 : i1 to i32
    %c0_i32_0 = arith.constant 0 : i32
    %2 = arith.cmpi ne, %1, %c0_i32_0 : i32
    scf.if %2 {
      %cst_19 = arith.constant 0.000000e+00 : f32
      %28 = vector.broadcast %cst_19 : f32 to vector<16x1xf32>
      %c0_20 = arith.constant 0 : index
      %c0_21 = arith.constant 0 : index
      %29 = vector.load %arg7[%c0_20, %c0_21] : memref<16x1xf32, #tpu.memory_space<vmem>>, vector<16x1xf32>
      tpu.vector_store %arg7[%c0_20, %c0_21], %28 {strides = array<i32>} : memref<16x1xf32, #tpu.memory_space<vmem>>, vector<16x1xf32>,
      %cst_22 = arith.constant 0.000000e+00 : f32
      %30 = vector.broadcast %cst_22 : f32 to vector<16x1xf32>
      %c0_23 = arith.constant 0 : index
      %c0_24 = arith.constant 0 : index
      %31 = vector.load %arg8[%c0_23, %c0_24] : memref<16x1xf32, #tpu.memory_space<vmem>>, vector<16x1xf32>
      tpu.vector_store %arg8[%c0_23, %c0_24], %30 {strides = array<i32>} : memref<16x1xf32, #tpu.memory_space<vmem>>, vector<16x1xf32>,
    } else {
    }
    %c0 = arith.constant 0 : index
    %c0_1 = arith.constant 0 : index
    %3 = vector.load %arg1[%c0, %c0_1] : memref<16x128xbf16, #tpu.memory_space<vmem>>, vector<16x128xbf16>
    %c0_2 = arith.constant 0 : index
    %c0_3 = arith.constant 0 : index
    %4 = vector.load %arg2[%c0_2, %c0_3] : memref<128x512xbf16, #tpu.memory_space<vmem>>, vector<128x512xbf16>
    %cst = arith.constant dense<0.000000e+00> : vector<16x512xf32>
    %5 = tpu.matmul %3, %4, %cst {dimension_numbers = #tpu.dot_dimension_numbers<[1], [0], [0], [1], [0, 0, 1, 1], [], []>} : vector<16x128xbf16>, vector<128x512xbf16>, vector<16x512xf32> -> vector<16x512xf32>
    %c512_i32 = arith.constant 512 : i32
    %6 = arith.muli %arg0, %c512_i32 : i32
    %7 = tpu.assume_multiple %6, 128 : i32
    %c0_4 = arith.constant 0 : index
    %8 = arith.index_cast %7 : i32 to index
    %9 = vector.load %arg6[%c0_4, %8] : memref<16x512xf32, #tpu.memory_space<vmem>>, vector<16x512xf32>
    tpu.vector_store %arg6[%c0_4, %8], %5 {strides = array<i32>} : memref<16x512xf32, #tpu.memory_space<vmem>>, vector<16x512xf32>,
    %cst_5 = arith.constant 0.000000e+00 : f32
    %10 = vector.broadcast %cst_5 : f32 to vector<16x1xf32>
    %cst_6 = arith.constant 0.000000e+00 : f32
    %11 = vector.broadcast %cst_6 : f32 to vector<16x1xf32>
    %cst_7 = arith.constant dense<0.000000e+00> : vector<16xf32>
    %12 = vector.multi_reduction <add>, %5, %cst_7 [1] : vector<16x512xf32> to vector<16xf32>
    %13 = vector.shape_cast %12 : vector<16xf32> to vector<16x1xf32>
    %14 = arith.addf %10, %13 : vector<16x1xf32>
    %15 = arith.mulf %5, %5 : vector<16x512xf32>
    %cst_8 = arith.constant dense<0.000000e+00> : vector<16xf32>
    %16 = vector.multi_reduction <add>, %15, %cst_8 [1] : vector<16x512xf32> to vector<16xf32>
    %17 = vector.shape_cast %16 : vector<16xf32> to vector<16x1xf32>
    %18 = arith.addf %11, %17 : vector<16x1xf32>
    %c0_9 = arith.constant 0 : index
    %c0_10 = arith.constant 0 : index
    %19 = vector.load %arg7[%c0_9, %c0_10] : memref<16x1xf32, #tpu.memory_space<vmem>>, vector<16x1xf32>
    %20 = arith.addf %19, %14 : vector<16x1xf32>
    %c0_11 = arith.constant 0 : index
    %c0_12 = arith.constant 0 : index
    %21 = vector.load %arg7[%c0_11, %c0_12] : memref<16x1xf32, #tpu.memory_space<vmem>>, vector<16x1xf32>
    tpu.vector_store %arg7[%c0_11, %c0_12], %20 {strides = array<i32>} : memref<16x1xf32, #tpu.memory_space<vmem>>, vector<16x1xf32>,
    %c0_13 = arith.constant 0 : index
    %c0_14 = arith.constant 0 : index
    %22 = vector.load %arg8[%c0_13, %c0_14] : memref<16x1xf32, #tpu.memory_space<vmem>>, vector<16x1xf32>
    %23 = arith.addf %22, %18 : vector<16x1xf32>
    %c0_15 = arith.constant 0 : index
    %c0_16 = arith.constant 0 : index
    %24 = vector.load %arg8[%c0_15, %c0_16] : memref<16x1xf32, #tpu.memory_space<vmem>>, vector<16x1xf32>
    tpu.vector_store %arg8[%c0_15, %c0_16], %23 {strides = array<i32>} : memref<16x1xf32, #tpu.memory_space<vmem>>, vector<16x1xf32>,
    %c0_i32_17 = arith.constant 0 : i32
    %25 = arith.cmpi eq, %arg0, %c0_i32_17 : i32
    %26 = arith.extui %25 : i1 to i32
    %c0_i32_18 = arith.constant 0 : i32
    %27 = arith.cmpi ne, %26, %c0_i32_18 : i32
    scf.if %27 {
      %c0_19 = arith.constant 0 : index
      %c0_20 = arith.constant 0 : index
      %28 = vector.load %arg7[%c0_19, %c0_20] : memref<16x1xf32, #tpu.memory_space<vmem>>, vector<16x1xf32>
      %cst_21 = arith.constant 0.001953125 : f32
      %29 = vector.broadcast %cst_21 : f32 to vector<16x1xf32>
      %30 = arith.mulf %28, %29 : vector<16x1xf32>
      %c0_22 = arith.constant 0 : index
      %c0_23 = arith.constant 0 : index
      %31 = vector.load %arg8[%c0_22, %c0_23] : memref<16x1xf32, #tpu.memory_space<vmem>>, vector<16x1xf32>
      %cst_24 = arith.constant 0.001953125 : f32
      %32 = vector.broadcast %cst_24 : f32 to vector<16x1xf32>
      %33 = arith.mulf %31, %32 : vector<16x1xf32>
      %34 = arith.mulf %30, %30 : vector<16x1xf32>
      %35 = arith.subf %33, %34 : vector<16x1xf32>
      %cst_25 = arith.constant 0.000000e+00 : f32
      %36 = vector.broadcast %cst_25 : f32 to vector<16x1xf32>
      %37 = arith.maximumf %35, %36 : vector<16x1xf32>
      %c0_26 = arith.constant 0 : index
      %c0_27 = arith.constant 0 : index
      %38 = vector.load %arg3[%c0_26, %c0_27] : memref<16x1xf32, #tpu.memory_space<vmem>>, vector<16x1xf32>
      %cst_28 = arith.constant 9.99999974E-6 : f32
      %39 = vector.broadcast %cst_28 : f32 to vector<16x1xf32>
      %40 = arith.addf %37, %39 : vector<16x1xf32>
      %41 = math.rsqrt %40 : vector<16x1xf32>
      %42 = arith.mulf %38, %41 : vector<16x1xf32>
      %c0_29 = arith.constant 0 : index
      %c0_30 = arith.constant 0 : index
      %43 = vector.load %arg4[%c0_29, %c0_30] : memref<16x1xf32, #tpu.memory_space<vmem>>, vector<16x1xf32>
      %44 = arith.mulf %30, %42 : vector<16x1xf32>
      %45 = arith.subf %43, %44 : vector<16x1xf32>
      %c0_31 = arith.constant 0 : index
      %c0_32 = arith.constant 0 : index
      %46 = vector.load %arg6[%c0_31, %c0_32] : memref<16x512xf32, #tpu.memory_space<vmem>>, vector<16x512xf32>
      %47 = vector.broadcast %42 : vector<16x1xf32> to vector<16x512xf32>
      %48 = arith.mulf %46, %47 : vector<16x512xf32>
      %49 = vector.broadcast %45 : vector<16x1xf32> to vector<16x512xf32>
      %50 = arith.addf %48, %49 : vector<16x512xf32>
      %cst_33 = arith.constant 0.000000e+00 : f32
      %51 = vector.broadcast %cst_33 : f32 to vector<16x512xf32>
      %52 = arith.cmpf ogt, %50, %51 : vector<16x512xf32>
      %cst_34 = arith.constant 2.000000e-01 : f32
      %53 = vector.broadcast %cst_34 : f32 to vector<16x512xf32>
      %54 = arith.mulf %53, %50 : vector<16x512xf32>
      %55 = arith.select %52, %50, %54 : vector<16x512xi1>, vector<16x512xf32>
      %56 = arith.truncf %55 : vector<16x512xf32> to vector<16x512xbf16>
      %c0_35 = arith.constant 0 : index
      %c0_36 = arith.constant 0 : index
      %57 = vector.load %arg5[%c0_35, %c0_36] : memref<16x512xbf16, #tpu.memory_space<vmem>>, vector<16x512xbf16>
      tpu.vector_store %arg5[%c0_35, %c0_36], %56 {strides = array<i32>} : memref<16x512xbf16, #tpu.memory_space<vmem>>, vector<16x512xbf16>,
    } else {
    }
    return
  }
  func.func @transform_0(%arg0: i32) -> (i32, i32) {
    %c0_i32 = arith.constant 0 : i32
    %c0_i32_0 = arith.constant 0 : i32
    %c0_i32_1 = arith.constant 0 : i32
    return %c0_i32, %c0_i32_0 : i32, i32
  }
  func.func @transform_1(%arg0: i32) -> (i32, i32) {
    %c0_i32 = arith.constant 0 : i32
    %c0_i32_0 = arith.constant 0 : i32
    return %c0_i32, %arg0 : i32, i32
  }
  func.func @transform_2(%arg0: i32) -> (i32, i32) {
    %c0_i32 = arith.constant 0 : i32
    %c0_i32_0 = arith.constant 0 : i32
    %c0_i32_1 = arith.constant 0 : i32
    return %c0_i32, %c0_i32_0 : i32, i32
  }
  func.func @transform_3(%arg0: i32) -> (i32, i32) {
    %c0_i32 = arith.constant 0 : i32
    %c0_i32_0 = arith.constant 0 : i32
    %c0_i32_1 = arith.constant 0 : i32
    return %c0_i32, %c0_i32_0 : i32, i32
  }
  func.func @transform_4(%arg0: i32) -> (i32, i32) {
    %c0_i32 = arith.constant 0 : i32
    %c0_i32_0 = arith.constant 0 : i32
    %c0_i32_1 = arith.constant 0 : i32
    return %c0_i32, %c0_i32_0 : i32, i32
  }
}

module attributes {stable_mosaic.version = 11 : i64} {
  func.func @_conv_bn_lrelu_kernel(%arg0: i32, %arg1: memref<32x256xbf16, #tpu.memory_space<vmem>>, %arg2: memref<256x128xbf16, #tpu.memory_space<vmem>>, %arg3: memref<32x1xf32, #tpu.memory_space<vmem>>, %arg4: memref<32x1xf32, #tpu.memory_space<vmem>>, %arg5: memref<32x128xbf16, #tpu.memory_space<vmem>>, %arg6: memref<32x128xf32, #tpu.memory_space<vmem>>, %arg7: memref<32x1xf32, #tpu.memory_space<vmem>>, %arg8: memref<32x1xf32, #tpu.memory_space<vmem>>) attributes {dimension_semantics = [#tpu.dimension_semantics<arbitrary>], iteration_bounds = array<i64: 1>, scalar_prefetch = 0 : i64, scratch_operands = 3 : i64, tpu.core_type = #tpu.core_type<tc>, window_params = [{pipeline_mode = #tpu.pipeline_mode<synchronous>, transform_indices = @transform_0, window_bounds = array<i64: 32, 256>}, {transform_indices = @transform_1, window_bounds = array<i64: 256, 128>}, {pipeline_mode = #tpu.pipeline_mode<synchronous>, transform_indices = @transform_2, window_bounds = array<i64: 32, 1>}, {pipeline_mode = #tpu.pipeline_mode<synchronous>, transform_indices = @transform_3, window_bounds = array<i64: 32, 1>}, {pipeline_mode = #tpu.pipeline_mode<synchronous>, transform_indices = @transform_4, window_bounds = array<i64: 32, 128>}]} {
    %c0_i32 = arith.constant 0 : i32
    %0 = arith.cmpi eq, %arg0, %c0_i32 : i32
    %1 = arith.extui %0 : i1 to i32
    %c0_i32_0 = arith.constant 0 : i32
    %2 = arith.cmpi ne, %1, %c0_i32_0 : i32
    scf.if %2 {
      %cst_19 = arith.constant 0.000000e+00 : f32
      %28 = vector.broadcast %cst_19 : f32 to vector<32x1xf32>
      %c0_20 = arith.constant 0 : index
      %c0_21 = arith.constant 0 : index
      %29 = vector.load %arg7[%c0_20, %c0_21] : memref<32x1xf32, #tpu.memory_space<vmem>>, vector<32x1xf32>
      tpu.vector_store %arg7[%c0_20, %c0_21], %28 {strides = array<i32>} : memref<32x1xf32, #tpu.memory_space<vmem>>, vector<32x1xf32>,
      %cst_22 = arith.constant 0.000000e+00 : f32
      %30 = vector.broadcast %cst_22 : f32 to vector<32x1xf32>
      %c0_23 = arith.constant 0 : index
      %c0_24 = arith.constant 0 : index
      %31 = vector.load %arg8[%c0_23, %c0_24] : memref<32x1xf32, #tpu.memory_space<vmem>>, vector<32x1xf32>
      tpu.vector_store %arg8[%c0_23, %c0_24], %30 {strides = array<i32>} : memref<32x1xf32, #tpu.memory_space<vmem>>, vector<32x1xf32>,
    } else {
    }
    %c0 = arith.constant 0 : index
    %c0_1 = arith.constant 0 : index
    %3 = vector.load %arg1[%c0, %c0_1] : memref<32x256xbf16, #tpu.memory_space<vmem>>, vector<32x256xbf16>
    %c0_2 = arith.constant 0 : index
    %c0_3 = arith.constant 0 : index
    %4 = vector.load %arg2[%c0_2, %c0_3] : memref<256x128xbf16, #tpu.memory_space<vmem>>, vector<256x128xbf16>
    %cst = arith.constant dense<0.000000e+00> : vector<32x128xf32>
    %5 = tpu.matmul %3, %4, %cst {dimension_numbers = #tpu.dot_dimension_numbers<[1], [0], [0], [1], [0, 0, 1, 1], [], []>} : vector<32x256xbf16>, vector<256x128xbf16>, vector<32x128xf32> -> vector<32x128xf32>
    %c128_i32 = arith.constant 128 : i32
    %6 = arith.muli %arg0, %c128_i32 : i32
    %7 = tpu.assume_multiple %6, 128 : i32
    %c0_4 = arith.constant 0 : index
    %8 = arith.index_cast %7 : i32 to index
    %9 = vector.load %arg6[%c0_4, %8] : memref<32x128xf32, #tpu.memory_space<vmem>>, vector<32x128xf32>
    tpu.vector_store %arg6[%c0_4, %8], %5 {strides = array<i32>} : memref<32x128xf32, #tpu.memory_space<vmem>>, vector<32x128xf32>,
    %cst_5 = arith.constant 0.000000e+00 : f32
    %10 = vector.broadcast %cst_5 : f32 to vector<32x1xf32>
    %cst_6 = arith.constant 0.000000e+00 : f32
    %11 = vector.broadcast %cst_6 : f32 to vector<32x1xf32>
    %cst_7 = arith.constant dense<0.000000e+00> : vector<32xf32>
    %12 = vector.multi_reduction <add>, %5, %cst_7 [1] : vector<32x128xf32> to vector<32xf32>
    %13 = vector.shape_cast %12 : vector<32xf32> to vector<32x1xf32>
    %14 = arith.addf %10, %13 : vector<32x1xf32>
    %15 = arith.mulf %5, %5 : vector<32x128xf32>
    %cst_8 = arith.constant dense<0.000000e+00> : vector<32xf32>
    %16 = vector.multi_reduction <add>, %15, %cst_8 [1] : vector<32x128xf32> to vector<32xf32>
    %17 = vector.shape_cast %16 : vector<32xf32> to vector<32x1xf32>
    %18 = arith.addf %11, %17 : vector<32x1xf32>
    %c0_9 = arith.constant 0 : index
    %c0_10 = arith.constant 0 : index
    %19 = vector.load %arg7[%c0_9, %c0_10] : memref<32x1xf32, #tpu.memory_space<vmem>>, vector<32x1xf32>
    %20 = arith.addf %19, %14 : vector<32x1xf32>
    %c0_11 = arith.constant 0 : index
    %c0_12 = arith.constant 0 : index
    %21 = vector.load %arg7[%c0_11, %c0_12] : memref<32x1xf32, #tpu.memory_space<vmem>>, vector<32x1xf32>
    tpu.vector_store %arg7[%c0_11, %c0_12], %20 {strides = array<i32>} : memref<32x1xf32, #tpu.memory_space<vmem>>, vector<32x1xf32>,
    %c0_13 = arith.constant 0 : index
    %c0_14 = arith.constant 0 : index
    %22 = vector.load %arg8[%c0_13, %c0_14] : memref<32x1xf32, #tpu.memory_space<vmem>>, vector<32x1xf32>
    %23 = arith.addf %22, %18 : vector<32x1xf32>
    %c0_15 = arith.constant 0 : index
    %c0_16 = arith.constant 0 : index
    %24 = vector.load %arg8[%c0_15, %c0_16] : memref<32x1xf32, #tpu.memory_space<vmem>>, vector<32x1xf32>
    tpu.vector_store %arg8[%c0_15, %c0_16], %23 {strides = array<i32>} : memref<32x1xf32, #tpu.memory_space<vmem>>, vector<32x1xf32>,
    %c0_i32_17 = arith.constant 0 : i32
    %25 = arith.cmpi eq, %arg0, %c0_i32_17 : i32
    %26 = arith.extui %25 : i1 to i32
    %c0_i32_18 = arith.constant 0 : i32
    %27 = arith.cmpi ne, %26, %c0_i32_18 : i32
    scf.if %27 {
      %c0_19 = arith.constant 0 : index
      %c0_20 = arith.constant 0 : index
      %28 = vector.load %arg7[%c0_19, %c0_20] : memref<32x1xf32, #tpu.memory_space<vmem>>, vector<32x1xf32>
      %cst_21 = arith.constant 7.812500e-03 : f32
      %29 = vector.broadcast %cst_21 : f32 to vector<32x1xf32>
      %30 = arith.mulf %28, %29 : vector<32x1xf32>
      %c0_22 = arith.constant 0 : index
      %c0_23 = arith.constant 0 : index
      %31 = vector.load %arg8[%c0_22, %c0_23] : memref<32x1xf32, #tpu.memory_space<vmem>>, vector<32x1xf32>
      %cst_24 = arith.constant 7.812500e-03 : f32
      %32 = vector.broadcast %cst_24 : f32 to vector<32x1xf32>
      %33 = arith.mulf %31, %32 : vector<32x1xf32>
      %34 = arith.mulf %30, %30 : vector<32x1xf32>
      %35 = arith.subf %33, %34 : vector<32x1xf32>
      %cst_25 = arith.constant 0.000000e+00 : f32
      %36 = vector.broadcast %cst_25 : f32 to vector<32x1xf32>
      %37 = arith.maximumf %35, %36 : vector<32x1xf32>
      %c0_26 = arith.constant 0 : index
      %c0_27 = arith.constant 0 : index
      %38 = vector.load %arg3[%c0_26, %c0_27] : memref<32x1xf32, #tpu.memory_space<vmem>>, vector<32x1xf32>
      %cst_28 = arith.constant 9.99999974E-6 : f32
      %39 = vector.broadcast %cst_28 : f32 to vector<32x1xf32>
      %40 = arith.addf %37, %39 : vector<32x1xf32>
      %41 = math.rsqrt %40 : vector<32x1xf32>
      %42 = arith.mulf %38, %41 : vector<32x1xf32>
      %c0_29 = arith.constant 0 : index
      %c0_30 = arith.constant 0 : index
      %43 = vector.load %arg4[%c0_29, %c0_30] : memref<32x1xf32, #tpu.memory_space<vmem>>, vector<32x1xf32>
      %44 = arith.mulf %30, %42 : vector<32x1xf32>
      %45 = arith.subf %43, %44 : vector<32x1xf32>
      %c0_31 = arith.constant 0 : index
      %c0_32 = arith.constant 0 : index
      %46 = vector.load %arg6[%c0_31, %c0_32] : memref<32x128xf32, #tpu.memory_space<vmem>>, vector<32x128xf32>
      %47 = vector.broadcast %42 : vector<32x1xf32> to vector<32x128xf32>
      %48 = arith.mulf %46, %47 : vector<32x128xf32>
      %49 = vector.broadcast %45 : vector<32x1xf32> to vector<32x128xf32>
      %50 = arith.addf %48, %49 : vector<32x128xf32>
      %cst_33 = arith.constant 0.000000e+00 : f32
      %51 = vector.broadcast %cst_33 : f32 to vector<32x128xf32>
      %52 = arith.cmpf ogt, %50, %51 : vector<32x128xf32>
      %cst_34 = arith.constant 2.000000e-01 : f32
      %53 = vector.broadcast %cst_34 : f32 to vector<32x128xf32>
      %54 = arith.mulf %53, %50 : vector<32x128xf32>
      %55 = arith.select %52, %50, %54 : vector<32x128xi1>, vector<32x128xf32>
      %56 = arith.truncf %55 : vector<32x128xf32> to vector<32x128xbf16>
      %c0_35 = arith.constant 0 : index
      %c0_36 = arith.constant 0 : index
      %57 = vector.load %arg5[%c0_35, %c0_36] : memref<32x128xbf16, #tpu.memory_space<vmem>>, vector<32x128xbf16>
      tpu.vector_store %arg5[%c0_35, %c0_36], %56 {strides = array<i32>} : memref<32x128xbf16, #tpu.memory_space<vmem>>, vector<32x128xbf16>,
    } else {
    }
    return
  }
  func.func @transform_0(%arg0: i32) -> (i32, i32) {
    %c0_i32 = arith.constant 0 : i32
    %c0_i32_0 = arith.constant 0 : i32
    %c0_i32_1 = arith.constant 0 : i32
    return %c0_i32, %c0_i32_0 : i32, i32
  }
  func.func @transform_1(%arg0: i32) -> (i32, i32) {
    %c0_i32 = arith.constant 0 : i32
    %c0_i32_0 = arith.constant 0 : i32
    return %c0_i32, %arg0 : i32, i32
  }
  func.func @transform_2(%arg0: i32) -> (i32, i32) {
    %c0_i32 = arith.constant 0 : i32
    %c0_i32_0 = arith.constant 0 : i32
    %c0_i32_1 = arith.constant 0 : i32
    return %c0_i32, %c0_i32_0 : i32, i32
  }
  func.func @transform_3(%arg0: i32) -> (i32, i32) {
    %c0_i32 = arith.constant 0 : i32
    %c0_i32_0 = arith.constant 0 : i32
    %c0_i32_1 = arith.constant 0 : i32
    return %c0_i32, %c0_i32_0 : i32, i32
  }
  func.func @transform_4(%arg0: i32) -> (i32, i32) {
    %c0_i32 = arith.constant 0 : i32
    %c0_i32_0 = arith.constant 0 : i32
    %c0_i32_1 = arith.constant 0 : i32
    return %c0_i32, %c0_i32_0 : i32, i32
  }
}

</mosaic_0001>

<llo_original>
// kernel: discriminator_forward.3
$region0: #{discriminator_forward.3}
  #allocation0 [shape = 'u32[]', space=smem, size = 0x4, offset = 0x4, fixed_abs, tag = 'smem constant byte address 0x4 - core index']
  #allocation1 [shape = 'u32[144,128]{1,0:T(1,128)}', space=vmem, size = 0x12000, scoped, tag = 'internal scratch']
  %s0 = inlined_call_operand.vmem [shape: bf16[8,48], index: 0, kind: input, shape index: {}]
  %s1 = inlined_call_operand.vmem [shape: bf16[48,2048], index: 1, kind: input, shape index: {}]
  %s2 = inlined_call_operand.vmem [shape: bf16[8,2048], index: 2, kind: output, shape index: {}]
  %s3 = sld [smem:[#allocation0]]
  $region18: #{discriminator_forward.3} parent=0
    _
  %s5 = ssub.s32 1, %s3
  %s6 = scalar_select 0, %s5, %s3
  // Predicated region
  $region2: #{discriminator_forward.3} parent=0 // pred_check
    _
  $region3: #{discriminator_forward.3} parent=0 // pred_check_branch
    %8 = sbr.rel (0) target = $region5
  $region4: #{discriminator_forward.3} parent=0 // pred_region
    _
  $region5: #{discriminator_forward.3} parent=0 // pred_fallthru
    _
  // Predicated region
  $region6: #{discriminator_forward.3} parent=0 // pred_check
    _
  $region7: #{discriminator_forward.3} parent=0 // pred_check_branch
    %10 = sbr.rel (0) target = $region9
  $region8: #{discriminator_forward.3} parent=0 // pred_region
    _
  $region9: #{discriminator_forward.3} parent=0 // pred_fallthru
    _
  %v12 = vld [vmem:[%s0] sm:$0xf]
  %v13 = vld [vmem:[%s1] sm:$0xff]
  %v14 = vld [vmem:[%s1 + $0x8] sm:$0xff]
  %v15 = vld [vmem:[%s1 + $0x10] sm:$0xff]
  %v16 = vld [vmem:[%s1 + $0x18] sm:$0xff]
  %v17 = vld [vmem:[%s1 + $0x20] sm:$0xff]
  %v18 = vld [vmem:[%s1 + $0x28] sm:$0xff]
  %v19 = vld [vmem:[%s1 + $0x30] sm:$0xff]
  %v20 = vld [vmem:[%s1 + $0x38] sm:$0xff]
  %v21 = vld [vmem:[%s1 + $0x40] sm:$0xff]
  %v22 = vld [vmem:[%s1 + $0x48] sm:$0xff]
  %v23 = vld [vmem:[%s1 + $0x50] sm:$0xff]
  %v24 = vld [vmem:[%s1 + $0x58] sm:$0xff]
  %v25 = vld [vmem:[%s1 + $0x60] sm:$0xff]
  %v26 = vld [vmem:[%s1 + $0x68] sm:$0xff]
  %v27 = vld [vmem:[%s1 + $0x70] sm:$0xff]
  %v28 = vld [vmem:[%s1 + $0x78] sm:$0xff]
  %v29 = vld [vmem:[%s1 + $0x80] sm:$0xff]
  %v30 = vld [vmem:[%s1 + $0x88] sm:$0xff]
  %v31 = vld [vmem:[%s1 + $0x90] sm:$0xff]
  %v32 = vld [vmem:[%s1 + $0x98] sm:$0xff]
  %v33 = vld [vmem:[%s1 + $0xa0] sm:$0xff]
  %v34 = vld [vmem:[%s1 + $0xa8] sm:$0xff]
  %v35 = vld [vmem:[%s1 + $0xb0] sm:$0xff]
  %v36 = vld [vmem:[%s1 + $0xb8] sm:$0xff]
  %v37 = vld [vmem:[%s1 + $0xc0] sm:$0xff]
  %v38 = vld [vmem:[%s1 + $0xc8] sm:$0xff]
  %v39 = vld [vmem:[%s1 + $0xd0] sm:$0xff]
  %v40 = vld [vmem:[%s1 + $0xd8] sm:$0xff]
  %v41 = vld [vmem:[%s1 + $0xe0] sm:$0xff]
  %v42 = vld [vmem:[%s1 + $0xe8] sm:$0xff]
  %v43 = vld [vmem:[%s1 + $0xf0] sm:$0xff]
  %v44 = vld [vmem:[%s1 + $0xf8] sm:$0xff]
  %v45 = vld [vmem:[%s1 + $0x100] sm:$0xff]
  %v46 = vld [vmem:[%s1 + $0x108] sm:$0xff]
  %v47 = vld [vmem:[%s1 + $0x110] sm:$0xff]
  %v48 = vld [vmem:[%s1 + $0x118] sm:$0xff]
  %v49 = vld [vmem:[%s1 + $0x120] sm:$0xff]
  %v50 = vld [vmem:[%s1 + $0x128] sm:$0xff]
  %v51 = vld [vmem:[%s1 + $0x130] sm:$0xff]
  %v52 = vld [vmem:[%s1 + $0x138] sm:$0xff]
  %v53 = vld [vmem:[%s1 + $0x140] sm:$0xff]
  %v54 = vld [vmem:[%s1 + $0x148] sm:$0xff]
  %v55 = vld [vmem:[%s1 + $0x150] sm:$0xff]
  %v56 = vld [vmem:[%s1 + $0x158] sm:$0xff]
  %v57 = vld [vmem:[%s1 + $0x160] sm:$0xff]
  %v58 = vld [vmem:[%s1 + $0x168] sm:$0xff]
  %v59 = vld [vmem:[%s1 + $0x170] sm:$0xff]
  %v60 = vld [vmem:[%s1 + $0x178] sm:$0xff]
  %v109 = vunpack.c.l.b16 %v13
  %v110 = vunpack.c.h.b16 %v13
  %v111 = vunpack.c.l.b16 %v14
  %v112 = vunpack.c.h.b16 %v14
  %v113 = vunpack.c.l.b16 %v15
  %v114 = vunpack.c.h.b16 %v15
  %v115 = vunpack.c.l.b16 %v16
  %v116 = vunpack.c.h.b16 %v16
  %v117 = vunpack.c.l.b16 %v17
  %v118 = vunpack.c.h.b16 %v17
  %v119 = vunpack.c.l.b16 %v18
  %v120 = vunpack.c.h.b16 %v18
  %v121 = vunpack.c.l.b16 %v19
  %v122 = vunpack.c.h.b16 %v19
  %v123 = vunpack.c.l.b16 %v20
  %v124 = vunpack.c.h.b16 %v20
  %v125 = vunpack.c.l.b16 %v21
  %v126 = vunpack.c.h.b16 %v21
  %v127 = vunpack.c.l.b16 %v22
  %v128 = vunpack.c.h.b16 %v22
  %v129 = vunpack.c.l.b16 %v23
  %v130 = vunpack.c.h.b16 %v23
  %v131 = vunpack.c.l.b16 %v24
  %v132 = vunpack.c.h.b16 %v24
  %v133 = vunpack.c.l.b16 %v25
  %v134 = vunpack.c.h.b16 %v25
  %v135 = vunpack.c.l.b16 %v26
  %v136 = vunpack.c.h.b16 %v26
  %v137 = vunpack.c.l.b16 %v27
  %v138 = vunpack.c.h.b16 %v27
  %v139 = vunpack.c.l.b16 %v28
  %v140 = vunpack.c.h.b16 %v28
  %v141 = vunpack.c.l.b16 %v29
  %v142 = vunpack.c.h.b16 %v29
  %v143 = vunpack.c.l.b16 %v30
  %v144 = vunpack.c.h.b16 %v30
  %v145 = vunpack.c.l.b16 %v31
  %v146 = vunpack.c.h.b16 %v31
  %v147 = vunpack.c.l.b16 %v32
  %v148 = vunpack.c.h.b16 %v32
  %v149 = vunpack.c.l.b16 %v33
  %v150 = vunpack.c.h.b16 %v33
  %v151 = vunpack.c.l.b16 %v34
  %v152 = vunpack.c.h.b16 %v34
  %v153 = vunpack.c.l.b16 %v35
  %v154 = vunpack.c.h.b16 %v35
  %v155 = vunpack.c.l.b16 %v36
  %v156 = vunpack.c.h.b16 %v36
  %v157 = vunpack.c.l.b16 %v37
  %v158 = vunpack.c.h.b16 %v37
  %v159 = vunpack.c.l.b16 %v38
  %v160 = vunpack.c.h.b16 %v38
  %v161 = vunpack.c.l.b16 %v39
  %v162 = vunpack.c.h.b16 %v39
  %v163 = vunpack.c.l.b16 %v40
  %v164 = vunpack.c.h.b16 %v40
  %v165 = vunpack.c.l.b16 %v41
  %v166 = vunpack.c.h.b16 %v41
  %v167 = vunpack.c.l.b16 %v42
  %v168 = vunpack.c.h.b16 %v42
  %v169 = vunpack.c.l.b16 %v43
  %v170 = vunpack.c.h.b16 %v43
  %v171 = vunpack.c.l.b16 %v44
  %v172 = vunpack.c.h.b16 %v44
  %v173 = vunpack.c.l.b16 %v45
  %v174 = vunpack.c.h.b16 %v45
  %v175 = vunpack.c.l.b16 %v46
  %v176 = vunpack.c.h.b16 %v46
  %v177 = vunpack.c.l.b16 %v47
  %v178 = vunpack.c.h.b16 %v47
  %v179 = vunpack.c.l.b16 %v48
  %v180 = vunpack.c.h.b16 %v48
  %v181 = vunpack.c.l.b16 %v49
  %v182 = vunpack.c.h.b16 %v49
  %v183 = vunpack.c.l.b16 %v50
  %v184 = vunpack.c.h.b16 %v50
  %v185 = vunpack.c.l.b16 %v51
  %v186 = vunpack.c.h.b16 %v51
  %v187 = vunpack.c.l.b16 %v52
  %v188 = vunpack.c.h.b16 %v52
  %v189 = vunpack.c.l.b16 %v53
  %v190 = vunpack.c.h.b16 %v53
  %v191 = vunpack.c.l.b16 %v54
  %v192 = vunpack.c.h.b16 %v54
  %v193 = vunpack.c.l.b16 %v55
  %v194 = vunpack.c.h.b16 %v55
  %v195 = vunpack.c.l.b16 %v56
  %v196 = vunpack.c.h.b16 %v56
  %v197 = vunpack.c.l.b16 %v57
  %v198 = vunpack.c.h.b16 %v57
  %v199 = vunpack.c.l.b16 %v58
  %v200 = vunpack.c.h.b16 %v58
  %v201 = vunpack.c.l.b16 %v59
  %v202 = vunpack.c.h.b16 %v59
  %v203 = vunpack.c.l.b16 %v60
  %v204 = vunpack.c.h.b16 %v60
  %v205 = vpack.c.b16 %v125, %v109
  %v206 = vpack.c.b16 %v126, %v110
  %v207 = vpack.c.b16 %v127, %v111
  %v208 = vpack.c.b16 %v128, %v112
  %v209 = vpack.c.b16 %v129, %v113
  %v210 = vpack.c.b16 %v130, %v114
  %v211 = vpack.c.b16 %v131, %v115
  %v212 = vpack.c.b16 %v132, %v116
  %v213 = vpack.c.b16 %v133, %v117
  %v214 = vpack.c.b16 %v134, %v118
  %v215 = vpack.c.b16 %v135, %v119
  %v216 = vpack.c.b16 %v136, %v120
  %v217 = vpack.c.b16 %v137, %v121
  %v218 = vpack.c.b16 %v138, %v122
  %v219 = vpack.c.b16 %v139, %v123
  %v220 = vpack.c.b16 %v140, %v124
  %v221 = vpack.c.b16 %v157, %v141
  %v222 = vpack.c.b16 %v158, %v142
  %v223 = vpack.c.b16 %v159, %v143
  %v224 = vpack.c.b16 %v160, %v144
  %v225 = vpack.c.b16 %v161, %v145
  %v226 = vpack.c.b16 %v162, %v146
  %v227 = vpack.c.b16 %v163, %v147
  %v228 = vpack.c.b16 %v164, %v148
  %v229 = vpack.c.b16 %v165, %v149
  %v230 = vpack.c.b16 %v166, %v150
  %v231 = vpack.c.b16 %v167, %v151
  %v232 = vpack.c.b16 %v168, %v152
  %v233 = vpack.c.b16 %v169, %v153
  %v234 = vpack.c.b16 %v170, %v154
  %v235 = vpack.c.b16 %v171, %v155
  %v236 = vpack.c.b16 %v172, %v156
  %v237 = vpack.c.b16 %v189, %v173
  %v238 = vpack.c.b16 %v190, %v174
  %v239 = vpack.c.b16 %v191, %v175
  %v240 = vpack.c.b16 %v192, %v176
  %v241 = vpack.c.b16 %v193, %v177
  %v242 = vpack.c.b16 %v194, %v178
  %v243 = vpack.c.b16 %v195, %v179
  %v244 = vpack.c.b16 %v196, %v180
  %v245 = vpack.c.b16 %v197, %v181
  %v246 = vpack.c.b16 %v198, %v182
  %v247 = vpack.c.b16 %v199, %v183
  %v248 = vpack.c.b16 %v200, %v184
  %v249 = vpack.c.b16 %v201, %v185
  %v250 = vpack.c.b16 %v202, %v186
  %v251 = vpack.c.b16 %v203, %v187
  %v252 = vpack.c.b16 %v204, %v188
  %vm301 = vcmask 392192
  %v303 = vsel %vm301, %v12, 0
  %305 = vmatprep.subr.bf16.mxu0 %v206
  %306 = vmatpush1.bf16.msra.mxu0 %v205
  %307 = vmatprep.subr.bf16.mxu0 %v222
  %308 = vmatpush1.bf16.msra.mxu0 %v221
  %309 = vmatprep.subr.bf16.mxu0 %v238
  %310 = vmatpush1.bf16.msra.mxu0 %v237
  %311 = vmatprep.subr.bf16.mxu0 0
  %312 = vmatpush1.bf16.msra.mxu0 0
  %313 = vmatprep.subr.bf16.mxu0 0
  %314 = vmatpush1.bf16.msra.mxu0 0
  %315 = vmatprep.subr.bf16.mxu0 0
  %316 = vmatpush1.bf16.msra.mxu0 0
  %317 = vmatprep.subr.bf16.mxu0 0
  %318 = vmatpush1.bf16.msra.mxu0 0
  %319 = vmatprep.subr.bf16.mxu0 0
  %320 = vmatpush1.bf16.msra.mxu0 0
  %321 = vmatprep.subr.bf16.mxu0 0
  %322 = vmatpush1.bf16.msra.mxu0 0
  %323 = vmatprep.subr.bf16.mxu0 0
  %324 = vmatpush1.bf16.msra.mxu0 0
  %325 = vmatprep.subr.bf16.mxu0 0
  %326 = vmatpush1.bf16.msra.mxu0 0
  %327 = vmatprep.subr.bf16.mxu0 0
  %328 = vmatpush1.bf16.msra.mxu0 0
  %329 = vmatprep.subr.bf16.mxu0 0
  %330 = vmatpush1.bf16.msra.mxu0 0
  %331 = vmatprep.subr.bf16.mxu0 0
  %332 = vmatpush1.bf16.msra.mxu0 0
  %333 = vmatprep.subr.bf16.mxu0 0
  %334 = vmatpush1.bf16.msra.mxu0 0
  %335 = vmatprep.subr.bf16.mxu0 0
  %336 = vmatpush1.bf16.msra.mxu0 0
  %337 = vmatprep.mubr.bf16.mxu0 0
  %338 = vmatmul.mubr.bf16.gmra.mrb[0].mxu0 %v303
  %v339 = vpop.f32.mrb[0].mxu0
  %v340 = vadd.f32 0.0, %v339
  %v341 = vpop.f32.mrb[0].mxu0
  %v342 = vadd.f32 0.0, %v341
  %v343 = vpop.f32.mrb[0].mxu0
  %v344 = vpop.f32.mrb[0].mxu0
  %345 = vdwg.mxu0
  %346 = vmatprep.subr.bf16.mxu0 %v208
  %347 = vmatpush1.bf16.msra.mxu0 %v207
  %348 = vmatprep.subr.bf16.mxu0 %v224
  %349 = vmatpush1.bf16.msra.mxu0 %v223
  %350 = vmatprep.subr.bf16.mxu0 %v240
  %351 = vmatpush1.bf16.msra.mxu0 %v239
  %352 = vmatprep.subr.bf16.mxu0 0
  %353 = vmatpush1.bf16.msra.mxu0 0
  %354 = vmatprep.subr.bf16.mxu0 0
  %355 = vmatpush1.bf16.msra.mxu0 0
  %356 = vmatprep.subr.bf16.mxu0 0
  %357 = vmatpush1.bf16.msra.mxu0 0
  %358 = vmatprep.subr.bf16.mxu0 0
  %359 = vmatpush1.bf16.msra.mxu0 0
  %360 = vmatprep.subr.bf16.mxu0 0
  %361 = vmatpush1.bf16.msra.mxu0 0
  %362 = vmatprep.subr.bf16.mxu0 0
  %363 = vmatpush1.bf16.msra.mxu0 0
  %364 = vmatprep.subr.bf16.mxu0 0
  %365 = vmatpush1.bf16.msra.mxu0 0
  %366 = vmatprep.subr.bf16.mxu0 0
  %367 = vmatpush1.bf16.msra.mxu0 0
  %368 = vmatprep.subr.bf16.mxu0 0
  %369 = vmatpush1.bf16.msra.mxu0 0
  %370 = vmatprep.subr.bf16.mxu0 0
  %371 = vmatpush1.bf16.msra.mxu0 0
  %372 = vmatprep.subr.bf16.mxu0 0
  %373 = vmatpush1.bf16.msra.mxu0 0
  %374 = vmatprep.subr.bf16.mxu0 0
  %375 = vmatpush1.bf16.msra.mxu0 0
  %376 = vmatprep.subr.bf16.mxu0 0
  %377 = vmatpush1.bf16.msra.mxu0 0
  %378 = vmatprep.mubr.bf16.mxu0 0
  %379 = vmatmul.mubr.bf16.gmra.mrb[0].mxu0 %v303
  %v380 = vpop.f32.mrb[0].mxu0
  %v381 = vadd.f32 0.0, %v380
  %v382 = vpop.f32.mrb[0].mxu0
  %v383 = vadd.f32 0.0, %v382
  %v384 = vpop.f32.mrb[0].mxu0
  %v385 = vpop.f32.mrb[0].mxu0
  %386 = vdwg.mxu0
  %387 = vmatprep.subr.bf16.mxu0 %v210
  %388 = vmatpush1.bf16.msra.mxu0 %v209
  %389 = vmatprep.subr.bf16.mxu0 %v226
  %390 = vmatpush1.bf16.msra.mxu0 %v225
  %391 = vmatprep.subr.bf16.mxu0 %v242
  %392 = vmatpush1.bf16.msra.mxu0 %v241
  %393 = vmatprep.subr.bf16.mxu0 0
  %394 = vmatpush1.bf16.msra.mxu0 0
  %395 = vmatprep.subr.bf16.mxu0 0
  %396 = vmatpush1.bf16.msra.mxu0 0
  %397 = vmatprep.subr.bf16.mxu0 0
  %398 = vmatpush1.bf16.msra.mxu0 0
  %399 = vmatprep.subr.bf16.mxu0 0
  %400 = vmatpush1.bf16.msra.mxu0 0
  %401 = vmatprep.subr.bf16.mxu0 0
  %402 = vmatpush1.bf16.msra.mxu0 0
  %403 = vmatprep.subr.bf16.mxu0 0
  %404 = vmatpush1.bf16.msra.mxu0 0
  %405 = vmatprep.subr.bf16.mxu0 0
  %406 = vmatpush1.bf16.msra.mxu0 0
  %407 = vmatprep.subr.bf16.mxu0 0
  %408 = vmatpush1.bf16.msra.mxu0 0
  %409 = vmatprep.subr.bf16.mxu0 0
  %410 = vmatpush1.bf16.msra.mxu0 0
  %411 = vmatprep.subr.bf16.mxu0 0
  %412 = vmatpush1.bf16.msra.mxu0 0
  %413 = vmatprep.subr.bf16.mxu0 0
  %414 = vmatpush1.bf16.msra.mxu0 0
  %415 = vmatprep.subr.bf16.mxu0 0
  %416 = vmatpush1.bf16.msra.mxu0 0
  %417 = vmatprep.subr.bf16.mxu0 0
  %418 = vmatpush1.bf16.msra.mxu0 0
  %419 = vmatprep.mubr.bf16.mxu0 0
  %420 = vmatmul.mubr.bf16.gmra.mrb[0].mxu0 %v303
  %v421 = vpop.f32.mrb[0].mxu0
  %v422 = vadd.f32 0.0, %v421
  %v423 = vpop.f32.mrb[0].mxu0
  %v424 = vadd.f32 0.0, %v423
  %v425 = vpop.f32.mrb[0].mxu0
  %v426 = vpop.f32.mrb[0].mxu0
  %427 = vdwg.mxu0
  %428 = vmatprep.subr.bf16.mxu0 %v212
  %429 = vmatpush1.bf16.msra.mxu0 %v211
  %430 = vmatprep.subr.bf16.mxu0 %v228
  %431 = vmatpush1.bf16.msra.mxu0 %v227
  %432 = vmatprep.subr.bf16.mxu0 %v244
  %433 = vmatpush1.bf16.msra.mxu0 %v243
  %434 = vmatprep.subr.bf16.mxu0 0
  %435 = vmatpush1.bf16.msra.mxu0 0
  %436 = vmatprep.subr.bf16.mxu0 0
  %437 = vmatpush1.bf16.msra.mxu0 0
  %438 = vmatprep.subr.bf16.mxu0 0
  %439 = vmatpush1.bf16.msra.mxu0 0
  %440 = vmatprep.subr.bf16.mxu0 0
  %441 = vmatpush1.bf16.msra.mxu0 0
  %442 = vmatprep.subr.bf16.mxu0 0
  %443 = vmatpush1.bf16.msra.mxu0 0
  %444 = vmatprep.subr.bf16.mxu0 0
  %445 = vmatpush1.bf16.msra.mxu0 0
  %446 = vmatprep.subr.bf16.mxu0 0
  %447 = vmatpush1.bf16.msra.mxu0 0
  %448 = vmatprep.subr.bf16.mxu0 0
  %449 = vmatpush1.bf16.msra.mxu0 0
  %450 = vmatprep.subr.bf16.mxu0 0
  %451 = vmatpush1.bf16.msra.mxu0 0
  %452 = vmatprep.subr.bf16.mxu0 0
  %453 = vmatpush1.bf16.msra.mxu0 0
  %454 = vmatprep.subr.bf16.mxu0 0
  %455 = vmatpush1.bf16.msra.mxu0 0
  %456 = vmatprep.subr.bf16.mxu0 0
  %457 = vmatpush1.bf16.msra.mxu0 0
  %458 = vmatprep.subr.bf16.mxu0 0
  %459 = vmatpush1.bf16.msra.mxu0 0
  %460 = vmatprep.mubr.bf16.mxu0 0
  %461 = vmatmul.mubr.bf16.gmra.mrb[0].mxu0 %v303
  %v462 = vpop.f32.mrb[0].mxu0
  %v463 = vadd.f32 0.0, %v462
  %v464 = vpop.f32.mrb[0].mxu0
  %v465 = vadd.f32 0.0, %v464
  %v466 = vpop.f32.mrb[0].mxu0
  %v467 = vpop.f32.mrb[0].mxu0
  %468 = vdwg.mxu0
  %469 = vmatprep.subr.bf16.mxu0 %v214
  %470 = vmatpush1.bf16.msra.mxu0 %v213
  %471 = vmatprep.subr.bf16.mxu0 %v230
  %472 = vmatpush1.bf16.msra.mxu0 %v229
  %473 = vmatprep.subr.bf16.mxu0 %v246
  %474 = vmatpush1.bf16.msra.mxu0 %v245
  %475 = vmatprep.subr.bf16.mxu0 0
  %476 = vmatpush1.bf16.msra.mxu0 0
  %477 = vmatprep.subr.bf16.mxu0 0
  %478 = vmatpush1.bf16.msra.mxu0 0
  %479 = vmatprep.subr.bf16.mxu0 0
  %480 = vmatpush1.bf16.msra.mxu0 0
  %481 = vmatprep.subr.bf16.mxu0 0
  %482 = vmatpush1.bf16.msra.mxu0 0
  %483 = vmatprep.subr.bf16.mxu0 0
  %484 = vmatpush1.bf16.msra.mxu0 0
  %485 = vmatprep.subr.bf16.mxu0 0
  %486 = vmatpush1.bf16.msra.mxu0 0
  %487 = vmatprep.subr.bf16.mxu0 0
  %488 = vmatpush1.bf16.msra.mxu0 0
  %489 = vmatprep.subr.bf16.mxu0 0
  %490 = vmatpush1.bf16.msra.mxu0 0
  %491 = vmatprep.subr.bf16.mxu0 0
  %492 = vmatpush1.bf16.msra.mxu0 0
  %493 = vmatprep.subr.bf16.mxu0 0
  %494 = vmatpush1.bf16.msra.mxu0 0
  %495 = vmatprep.subr.bf16.mxu0 0
  %496 = vmatpush1.bf16.msra.mxu0 0
  %497 = vmatprep.subr.bf16.mxu0 0
  %498 = vmatpush1.bf16.msra.mxu0 0
  %499 = vmatprep.subr.bf16.mxu0 0
  %500 = vmatpush1.bf16.msra.mxu0 0
  %501 = vmatprep.mubr.bf16.mxu0 0
  %502 = vmatmul.mubr.bf16.gmra.mrb[0].mxu0 %v303
  %v503 = vpop.f32.mrb[0].mxu0
  %v504 = vadd.f32 0.0, %v503
  %v505 = vpop.f32.mrb[0].mxu0
  %v506 = vadd.f32 0.0, %v505
  %v507 = vpop.f32.mrb[0].mxu0
  %v508 = vpop.f32.mrb[0].mxu0
  %509 = vdwg.mxu0
  %510 = vmatprep.subr.bf16.mxu0 %v216
  %511 = vmatpush1.bf16.msra.mxu0 %v215
  %512 = vmatprep.subr.bf16.mxu0 %v232
  %513 = vmatpush1.bf16.msra.mxu0 %v231
  %514 = vmatprep.subr.bf16.mxu0 %v248
  %515 = vmatpush1.bf16.msra.mxu0 %v247
  %516 = vmatprep.subr.bf16.mxu0 0
  %517 = vmatpush1.bf16.msra.mxu0 0
  %518 = vmatprep.subr.bf16.mxu0 0
  %519 = vmatpush1.bf16.msra.mxu0 0
  %520 = vmatprep.subr.bf16.mxu0 0
  %521 = vmatpush1.bf16.msra.mxu0 0
  %522 = vmatprep.subr.bf16.mxu0 0
  %523 = vmatpush1.bf16.msra.mxu0 0
  %524 = vmatprep.subr.bf16.mxu0 0
  %525 = vmatpush1.bf16.msra.mxu0 0
  %526 = vmatprep.subr.bf16.mxu0 0
  %527 = vmatpush1.bf16.msra.mxu0 0
  %528 = vmatprep.subr.bf16.mxu0 0
  %529 = vmatpush1.bf16.msra.mxu0 0
  %530 = vmatprep.subr.bf16.mxu0 0
  %531 = vmatpush1.bf16.msra.mxu0 0
  %532 = vmatprep.subr.bf16.mxu0 0
  %533 = vmatpush1.bf16.msra.mxu0 0
  %534 = vmatprep.subr.bf16.mxu0 0
  %535 = vmatpush1.bf16.msra.mxu0 0
  %536 = vmatprep.subr.bf16.mxu0 0
  %537 = vmatpush1.bf16.msra.mxu0 0
  %538 = vmatprep.subr.bf16.mxu0 0
  %539 = vmatpush1.bf16.msra.mxu0 0
  %540 = vmatprep.subr.bf16.mxu0 0
  %541 = vmatpush1.bf16.msra.mxu0 0
  %542 = vmatprep.mubr.bf16.mxu0 0
  %543 = vmatmul.mubr.bf16.gmra.mrb[0].mxu0 %v303
  %v544 = vpop.f32.mrb[0].mxu0
  %v545 = vadd.f32 0.0, %v544
  %v546 = vpop.f32.mrb[0].mxu0
  %v547 = vadd.f32 0.0, %v546
  %v548 = vpop.f32.mrb[0].mxu0
  %v549 = vpop.f32.mrb[0].mxu0
  %550 = vdwg.mxu0
  %551 = vmatprep.subr.bf16.mxu0 %v218
  %552 = vmatpush1.bf16.msra.mxu0 %v217
  %553 = vmatprep.subr.bf16.mxu0 %v234
  %554 = vmatpush1.bf16.msra.mxu0 %v233
  %555 = vmatprep.subr.bf16.mxu0 %v250
  %556 = vmatpush1.bf16.msra.mxu0 %v249
  %557 = vmatprep.subr.bf16.mxu0 0
  %558 = vmatpush1.bf16.msra.mxu0 0
  %559 = vmatprep.subr.bf16.mxu0 0
  %560 = vmatpush1.bf16.msra.mxu0 0
  %561 = vmatprep.subr.bf16.mxu0 0
  %562 = vmatpush1.bf16.msra.mxu0 0
  %563 = vmatprep.subr.bf16.mxu0 0
  %564 = vmatpush1.bf16.msra.mxu0 0
  %565 = vmatprep.subr.bf16.mxu0 0
  %566 = vmatpush1.bf16.msra.mxu0 0
  %567 = vmatprep.subr.bf16.mxu0 0
  %568 = vmatpush1.bf16.msra.mxu0 0
  %569 = vmatprep.subr.bf16.mxu0 0
  %570 = vmatpush1.bf16.msra.mxu0 0
  %571 = vmatprep.subr.bf16.mxu0 0
  %572 = vmatpush1.bf16.msra.mxu0 0
  %573 = vmatprep.subr.bf16.mxu0 0
  %574 = vmatpush1.bf16.msra.mxu0 0
  %575 = vmatprep.subr.bf16.mxu0 0
  %576 = vmatpush1.bf16.msra.mxu0 0
  %577 = vmatprep.subr.bf16.mxu0 0
  %578 = vmatpush1.bf16.msra.mxu0 0
  %579 = vmatprep.subr.bf16.mxu0 0
  %580 = vmatpush1.bf16.msra.mxu0 0
  %581 = vmatprep.subr.bf16.mxu0 0
  %582 = vmatpush1.bf16.msra.mxu0 0
  %583 = vmatprep.mubr.bf16.mxu0 0
  %584 = vmatmul.mubr.bf16.gmra.mrb[0].mxu0 %v303
  %v585 = vpop.f32.mrb[0].mxu0
  %v586 = vadd.f32 0.0, %v585
  %v587 = vpop.f32.mrb[0].mxu0
  %v588 = vadd.f32 0.0, %v587
  %v589 = vpop.f32.mrb[0].mxu0
  %v590 = vpop.f32.mrb[0].mxu0
  %591 = vdwg.mxu0
  %592 = vmatprep.subr.bf16.mxu0 %v220
  %593 = vmatpush1.bf16.msra.mxu0 %v219
  %594 = vmatprep.subr.bf16.mxu0 %v236
  %595 = vmatpush1.bf16.msra.mxu0 %v235
  %596 = vmatprep.subr.bf16.mxu0 %v252
  %597 = vmatpush1.bf16.msra.mxu0 %v251
  %598 = vmatprep.subr.bf16.mxu0 0
  %599 = vmatpush1.bf16.msra.mxu0 0
  %600 = vmatprep.subr.bf16.mxu0 0
  %601 = vmatpush1.bf16.msra.mxu0 0
  %602 = vmatprep.subr.bf16.mxu0 0
  %603 = vmatpush1.bf16.msra.mxu0 0
  %604 = vmatprep.subr.bf16.mxu0 0
  %605 = vmatpush1.bf16.msra.mxu0 0
  %606 = vmatprep.subr.bf16.mxu0 0
  %607 = vmatpush1.bf16.msra.mxu0 0
  %608 = vmatprep.subr.bf16.mxu0 0
  %609 = vmatpush1.bf16.msra.mxu0 0
  %610 = vmatprep.subr.bf16.mxu0 0
  %611 = vmatpush1.bf16.msra.mxu0 0
  %612 = vmatprep.subr.bf16.mxu0 0
  %613 = vmatpush1.bf16.msra.mxu0 0
  %614 = vmatprep.subr.bf16.mxu0 0
  %615 = vmatpush1.bf16.msra.mxu0 0
  %616 = vmatprep.subr.bf16.mxu0 0
  %617 = vmatpush1.bf16.msra.mxu0 0
  %618 = vmatprep.subr.bf16.mxu0 0
  %619 = vmatpush1.bf16.msra.mxu0 0
  %620 = vmatprep.subr.bf16.mxu0 0
  %621 = vmatpush1.bf16.msra.mxu0 0
  %622 = vmatprep.subr.bf16.mxu0 0
  %623 = vmatpush1.bf16.msra.mxu0 0
  %624 = vmatprep.mubr.bf16.mxu0 0
  %625 = vmatmul.mubr.bf16.gmra.mrb[0].mxu0 %v303
  %v626 = vpop.f32.mrb[0].mxu0
  %v627 = vadd.f32 0.0, %v626
  %v628 = vpop.f32.mrb[0].mxu0
  %v629 = vadd.f32 0.0, %v628
  %v630 = vpop.f32.mrb[0].mxu0
  %v631 = vpop.f32.mrb[0].mxu0
  %632 = vdwg.mxu0
  %vm633 = vcmp.gt.f32.partialorder %v340, 0.0
  %vm634 = vcmp.gt.f32.partialorder %v342, 0.0
  %vm635 = vcmp.gt.f32.partialorder %v381, 0.0
  %vm636 = vcmp.gt.f32.partialorder %v383, 0.0
  %vm637 = vcmp.gt.f32.partialorder %v422, 0.0
  %vm638 = vcmp.gt.f32.partialorder %v424, 0.0
  %vm639 = vcmp.gt.f32.partialorder %v463, 0.0
  %vm640 = vcmp.gt.f32.partialorder %v465, 0.0
  %vm641 = vcmp.gt.f32.partialorder %v504, 0.0
  %vm642 = vcmp.gt.f32.partialorder %v506, 0.0
  %vm643 = vcmp.gt.f32.partialorder %v545, 0.0
  %vm644 = vcmp.gt.f32.partialorder %v547, 0.0
  %vm645 = vcmp.gt.f32.partialorder %v586, 0.0
  %vm646 = vcmp.gt.f32.partialorder %v588, 0.0
  %vm647 = vcmp.gt.f32.partialorder %v627, 0.0
  %vm648 = vcmp.gt.f32.partialorder %v629, 0.0
  %v649 = vmul.f32 %v340, 0.2
  %v650 = vmul.f32 %v342, 0.2
  %v651 = vmul.f32 %v381, 0.2
  %v652 = vmul.f32 %v383, 0.2
  %v653 = vmul.f32 %v422, 0.2
  %v654 = vmul.f32 %v424, 0.2
  %v655 = vmul.f32 %v463, 0.2
  %v656 = vmul.f32 %v465, 0.2
  %v657 = vmul.f32 %v504, 0.2
  %v658 = vmul.f32 %v506, 0.2
  %v659 = vmul.f32 %v545, 0.2
  %v660 = vmul.f32 %v547, 0.2
  %v661 = vmul.f32 %v586, 0.2
  %v662 = vmul.f32 %v588, 0.2
  %v663 = vmul.f32 %v627, 0.2
  %v664 = vmul.f32 %v629, 0.2
  %v665 = vsel %vm633, %v340, %v649
  %v666 = vsel %vm634, %v342, %v650
  %v667 = vsel %vm635, %v381, %v651
  %v668 = vsel %vm636, %v383, %v652
  %v669 = vsel %vm637, %v422, %v653
  %v670 = vsel %vm638, %v424, %v654
  %v671 = vsel %vm639, %v463, %v655
  %v672 = vsel %vm640, %v465, %v656
  %v673 = vsel %vm641, %v504, %v657
  %v674 = vsel %vm642, %v506, %v658
  %v675 = vsel %vm643, %v545, %v659
  %v676 = vsel %vm644, %v547, %v660
  %v677 = vsel %vm645, %v586, %v661
  %v678 = vsel %vm646, %v588, %v662
  %v679 = vsel %vm647, %v627, %v663
  %v680 = vsel %vm648, %v629, %v664
  %v681 = vpack.c.bf16 %v665, %v665
  %v682 = vpack.c.bf16 %v666, %v666
  %v683 = vpack.c.bf16 %v667, %v667
  %v684 = vpack.c.bf16 %v668, %v668
  %v685 = vpack.c.bf16 %v669, %v669
  %v686 = vpack.c.bf16 %v670, %v670
  %v687 = vpack.c.bf16 %v671, %v671
  %v688 = vpack.c.bf16 %v672, %v672
  %v689 = vpack.c.bf16 %v673, %v673
  %v690 = vpack.c.bf16 %v674, %v674
  %v691 = vpack.c.bf16 %v675, %v675
  %v692 = vpack.c.bf16 %v676, %v676
  %v693 = vpack.c.bf16 %v677, %v677
  %v694 = vpack.c.bf16 %v678, %v678
  %v695 = vpack.c.bf16 %v679, %v679
  %v696 = vpack.c.bf16 %v680, %v680
  %v713 = vunpack.c.l.b16 %v681
  %v714 = vunpack.c.l.b16 %v682
  %v715 = vunpack.c.l.b16 %v683
  %v716 = vunpack.c.l.b16 %v684
  %v717 = vunpack.c.l.b16 %v685
  %v718 = vunpack.c.l.b16 %v686
  %v719 = vunpack.c.l.b16 %v687
  %v720 = vunpack.c.l.b16 %v688
  %v721 = vunpack.c.l.b16 %v689
  %v722 = vunpack.c.l.b16 %v690
  %v723 = vunpack.c.l.b16 %v691
  %v724 = vunpack.c.l.b16 %v692
  %v725 = vunpack.c.l.b16 %v693
  %v726 = vunpack.c.l.b16 %v694
  %v727 = vunpack.c.l.b16 %v695
  %v728 = vunpack.c.l.b16 %v696
  %v729 = vpack.c.b16 %v714, %v713
  %v730 = vpack.c.b16 %v716, %v715
  %v731 = vpack.c.b16 %v718, %v717
  %v732 = vpack.c.b16 %v720, %v719
  %v733 = vpack.c.b16 %v722, %v721
  %v734 = vpack.c.b16 %v724, %v723
  %v735 = vpack.c.b16 %v726, %v725
  %v736 = vpack.c.b16 %v728, %v727
  %745 = vst [vmem:[%s2] sm:$0xff] %v729
  %746 = vst [vmem:[%s2 + $0x8] sm:$0xff] %v730
  %747 = vst [vmem:[%s2 + $0x10] sm:$0xff] %v731
  %748 = vst [vmem:[%s2 + $0x18] sm:$0xff] %v732
  %749 = vst [vmem:[%s2 + $0x20] sm:$0xff] %v733
  %750 = vst [vmem:[%s2 + $0x28] sm:$0xff] %v734
  %751 = vst [vmem:[%s2 + $0x30] sm:$0xff] %v735
  %752 = vst [vmem:[%s2 + $0x38] sm:$0xff] %v736
  // Predicated region
  $region10: #{discriminator_forward.3} parent=0 // pred_check
    _
  $region11: #{discriminator_forward.3} parent=0 // pred_check_branch
    %754 = sbr.rel (0) target = $region13
  $region12: #{discriminator_forward.3} parent=0 // pred_region
    _
  $region13: #{discriminator_forward.3} parent=0 // pred_fallthru
    _
  // Predicated region
  $region14: #{discriminator_forward.3} parent=0 // pred_check
    _
  $region15: #{discriminator_forward.3} parent=0 // pred_check_branch
    %756 = sbr.rel (0) target = $region17
  $region16: #{discriminator_forward.3} parent=0 // pred_region
    _
  $region17: #{discriminator_forward.3} parent=0 // pred_fallthru
    _

// kernel: discriminator_forward.4
$region0: #{discriminator_forward.4}
  #allocation0 [shape = 'u32[]', space=smem, size = 0x4, offset = 0x4, fixed_abs, tag = 'smem constant byte address 0x4 - core index']
  #allocation1 [shape = 'u32[144,128]{1,0:T(1,128)}', space=vmem, size = 0x12000, scoped, tag = 'internal scratch']
  #allocation2 [shape = 'f32[16,512]{1,0:T(8,128)}', space=vmem, size = 0x8000, scoped, tag = 'scratch operand']
  #allocation3 [shape = 'f32[16,1]{1,0:T(8,128)}', space=vmem, size = 0x2000, scoped, tag = 'scratch operand']
  #allocation4 [shape = 'f32[16,1]{1,0:T(8,128)}', space=vmem, size = 0x2000, scoped, tag = 'scratch operand']
  %s0 = inlined_call_operand.vmem [shape: bf16[16,128], index: 0, kind: input, shape index: {}]
  %s1 = inlined_call_operand.vmem [shape: bf16[128,512], index: 1, kind: input, shape index: {}]
  %s2 = inlined_call_operand.vmem [shape: f32[16,1], index: 2, kind: input, shape index: {}]
  %s3 = inlined_call_operand.vmem [shape: f32[16,1], index: 3, kind: input, shape index: {}]
  %s4 = inlined_call_operand.vmem [shape: bf16[16,512], index: 4, kind: output, shape index: {}]
  %s5 = sld [smem:[#allocation0]]
  $region34: #{discriminator_forward.4} parent=0
    _
  %s7 = ssub.s32 1, %s5
  %s8 = scalar_select 0, %s7, %s5
  // Predicated region
  $region2: #{discriminator_forward.4} parent=0 // pred_check
    _
  $region3: #{discriminator_forward.4} parent=0 // pred_check_branch
    %10 = sbr.rel (0) target = $region5
  $region4: #{discriminator_forward.4} parent=0 // pred_region
    _
  $region5: #{discriminator_forward.4} parent=0 // pred_fallthru
    _
  // Predicated region
  $region6: #{discriminator_forward.4} parent=0 // pred_check
    _
  $region7: #{discriminator_forward.4} parent=0 // pred_check_branch
    %12 = sbr.rel (0) target = $region9
  $region8: #{discriminator_forward.4} parent=0 // pred_region
    _
  $region9: #{discriminator_forward.4} parent=0 // pred_fallthru
    _
  // Predicated region
  $region10: #{discriminator_forward.4} parent=0 // pred_check
    _
  $region11: #{discriminator_forward.4} parent=0 // pred_check_branch
    %14 = sbr.rel (0) target = $region13
  $region12: #{discriminator_forward.4} parent=0 // pred_region
    _
  $region13: #{discriminator_forward.4} parent=0 // pred_fallthru
    _
  // Predicated region
  $region14: #{discriminator_forward.4} parent=0 // pred_check
    _
  $region15: #{discriminator_forward.4} parent=0 // pred_check_branch
    %16 = sbr.rel (0) target = $region17
  $region16: #{discriminator_forward.4} parent=0 // pred_region
    _
  $region17: #{discriminator_forward.4} parent=0 // pred_fallthru
    _
  %p18 = scmp.eq.s32.totalorder 0, 0
  // Predicated region
  $region18: #{discriminator_forward.4} parent=0 // pred_check
    %p19 = pneg %p18
  $region19: #{discriminator_forward.4} parent=0 // pred_check_branch
    %21 = sbr.rel (%p19) target = $region21
  $region20: #{discriminator_forward.4} parent=0 // pred_region
    %vm22 = vcmask 7168
    %23 = vst.msk [vmem:[#allocation3] sm:$0xff] %vm22, 0.0
    %24 = vst.msk [vmem:[#allocation3 + $0x8] sm:$0xff] %vm22, 0.0
    %25 = vst.msk [vmem:[#allocation4] sm:$0xff] %vm22, 0.0
    %26 = vst.msk [vmem:[#allocation4 + $0x8] sm:$0xff] %vm22, 0.0
  $region21: #{discriminator_forward.4} parent=0 // pred_fallthru
    _
  %v27 = vld [vmem:[%s0] sm:$0xf]
  %v28 = vld [vmem:[%s0 + $0x4] sm:$0xf]
  %v29 = vld [vmem:[%s1] sm:$0xff]
  %v30 = vld [vmem:[%s1 + $0x8] sm:$0xff]
  %v31 = vld [vmem:[%s1 + $0x10] sm:$0xff]
  %v32 = vld [vmem:[%s1 + $0x18] sm:$0xff]
  %v33 = vld [vmem:[%s1 + $0x20] sm:$0xff]
  %v34 = vld [vmem:[%s1 + $0x28] sm:$0xff]
  %v35 = vld [vmem:[%s1 + $0x30] sm:$0xff]
  %v36 = vld [vmem:[%s1 + $0x38] sm:$0xff]
  %v37 = vld [vmem:[%s1 + $0x40] sm:$0xff]
  %v38 = vld [vmem:[%s1 + $0x48] sm:$0xff]
  %v39 = vld [vmem:[%s1 + $0x50] sm:$0xff]
  %v40 = vld [vmem:[%s1 + $0x58] sm:$0xff]
  %v41 = vld [vmem:[%s1 + $0x60] sm:$0xff]
  %v42 = vld [vmem:[%s1 + $0x68] sm:$0xff]
  %v43 = vld [vmem:[%s1 + $0x70] sm:$0xff]
  %v44 = vld [vmem:[%s1 + $0x78] sm:$0xff]
  %v45 = vld [vmem:[%s1 + $0x80] sm:$0xff]
  %v46 = vld [vmem:[%s1 + $0x88] sm:$0xff]
  %v47 = vld [vmem:[%s1 + $0x90] sm:$0xff]
  %v48 = vld [vmem:[%s1 + $0x98] sm:$0xff]
  %v49 = vld [vmem:[%s1 + $0xa0] sm:$0xff]
  %v50 = vld [vmem:[%s1 + $0xa8] sm:$0xff]
  %v51 = vld [vmem:[%s1 + $0xb0] sm:$0xff]
  %v52 = vld [vmem:[%s1 + $0xb8] sm:$0xff]
  %v53 = vld [vmem:[%s1 + $0xc0] sm:$0xff]
  %v54 = vld [vmem:[%s1 + $0xc8] sm:$0xff]
  %v55 = vld [vmem:[%s1 + $0xd0] sm:$0xff]
  %v56 = vld [vmem:[%s1 + $0xd8] sm:$0xff]
  %v57 = vld [vmem:[%s1 + $0xe0] sm:$0xff]
  %v58 = vld [vmem:[%s1 + $0xe8] sm:$0xff]
  %v59 = vld [vmem:[%s1 + $0xf0] sm:$0xff]
  %v60 = vld [vmem:[%s1 + $0xf8] sm:$0xff]
  %v63 = vunpack.c.l.b16 %v27
  %v64 = vunpack.c.l.b16 %v28
  %v65 = vpack.c.b16 %v64, %v63
  %v99 = vunpack.c.l.b16 %v29
  %v100 = vunpack.c.h.b16 %v29
  %v101 = vunpack.c.l.b16 %v30
  %v102 = vunpack.c.h.b16 %v30
  %v103 = vunpack.c.l.b16 %v31
  %v104 = vunpack.c.h.b16 %v31
  %v105 = vunpack.c.l.b16 %v32
  %v106 = vunpack.c.h.b16 %v32
  %v107 = vunpack.c.l.b16 %v33
  %v108 = vunpack.c.h.b16 %v33
  %v109 = vunpack.c.l.b16 %v34
  %v110 = vunpack.c.h.b16 %v34
  %v111 = vunpack.c.l.b16 %v35
  %v112 = vunpack.c.h.b16 %v35
  %v113 = vunpack.c.l.b16 %v36
  %v114 = vunpack.c.h.b16 %v36
  %v115 = vunpack.c.l.b16 %v37
  %v116 = vunpack.c.h.b16 %v37
  %v117 = vunpack.c.l.b16 %v38
  %v118 = vunpack.c.h.b16 %v38
  %v119 = vunpack.c.l.b16 %v39
  %v120 = vunpack.c.h.b16 %v39
  %v121 = vunpack.c.l.b16 %v40
  %v122 = vunpack.c.h.b16 %v40
  %v123 = vunpack.c.l.b16 %v41
  %v124 = vunpack.c.h.b16 %v41
  %v125 = vunpack.c.l.b16 %v42
  %v126 = vunpack.c.h.b16 %v42
  %v127 = vunpack.c.l.b16 %v43
  %v128 = vunpack.c.h.b16 %v43
  %v129 = vunpack.c.l.b16 %v44
  %v130 = vunpack.c.h.b16 %v44
  %v131 = vunpack.c.l.b16 %v45
  %v132 = vunpack.c.h.b16 %v45
  %v133 = vunpack.c.l.b16 %v46
  %v134 = vunpack.c.h.b16 %v46
  %v135 = vunpack.c.l.b16 %v47
  %v136 = vunpack.c.h.b16 %v47
  %v137 = vunpack.c.l.b16 %v48
  %v138 = vunpack.c.h.b16 %v48
  %v139 = vunpack.c.l.b16 %v49
  %v140 = vunpack.c.h.b16 %v49
  %v141 = vunpack.c.l.b16 %v50
  %v142 = vunpack.c.h.b16 %v50
  %v143 = vunpack.c.l.b16 %v51
  %v144 = vunpack.c.h.b16 %v51
  %v145 = vunpack.c.l.b16 %v52
  %v146 = vunpack.c.h.b16 %v52
  %v147 = vunpack.c.l.b16 %v53
  %v148 = vunpack.c.h.b16 %v53
  %v149 = vunpack.c.l.b16 %v54
  %v150 = vunpack.c.h.b16 %v54
  %v151 = vunpack.c.l.b16 %v55
  %v152 = vunpack.c.h.b16 %v55
  %v153 = vunpack.c.l.b16 %v56
  %v154 = vunpack.c.h.b16 %v56
  %v155 = vunpack.c.l.b16 %v57
  %v156 = vunpack.c.h.b16 %v57
  %v157 = vunpack.c.l.b16 %v58
  %v158 = vunpack.c.h.b16 %v58
  %v159 = vunpack.c.l.b16 %v59
  %v160 = vunpack.c.h.b16 %v59
  %v161 = vunpack.c.l.b16 %v60
  %v162 = vunpack.c.h.b16 %v60
  %v163 = vpack.c.b16 %v103, %v99
  %v164 = vpack.c.b16 %v104, %v100
  %v165 = vpack.c.b16 %v105, %v101
  %v166 = vpack.c.b16 %v106, %v102
  %v167 = vpack.c.b16 %v111, %v107
  %v168 = vpack.c.b16 %v112, %v108
  %v169 = vpack.c.b16 %v113, %v109
  %v170 = vpack.c.b16 %v114, %v110
  %v171 = vpack.c.b16 %v119, %v115
  %v172 = vpack.c.b16 %v120, %v116
  %v173 = vpack.c.b16 %v121, %v117
  %v174 = vpack.c.b16 %v122, %v118
  %v175 = vpack.c.b16 %v127, %v123
  %v176 = vpack.c.b16 %v128, %v124
  %v177 = vpack.c.b16 %v129, %v125
  %v178 = vpack.c.b16 %v130, %v126
  %v179 = vpack.c.b16 %v135, %v131
  %v180 = vpack.c.b16 %v136, %v132
  %v181 = vpack.c.b16 %v137, %v133
  %v182 = vpack.c.b16 %v138, %v134
  %v183 = vpack.c.b16 %v143, %v139
  %v184 = vpack.c.b16 %v144, %v140
  %v185 = vpack.c.b16 %v145, %v141
  %v186 = vpack.c.b16 %v146, %v142
  %v187 = vpack.c.b16 %v151, %v147
  %v188 = vpack.c.b16 %v152, %v148
  %v189 = vpack.c.b16 %v153, %v149
  %v190 = vpack.c.b16 %v154, %v150
  %v191 = vpack.c.b16 %v159, %v155
  %v192 = vpack.c.b16 %v160, %v156
  %v193 = vpack.c.b16 %v161, %v157
  %v194 = vpack.c.b16 %v162, %v158
  %227 = vmatprep.subr.bf16.mxu0 %v164
  %228 = vmatpush1.bf16.msra.mxu0 %v163
  %229 = vmatprep.subr.bf16.mxu0 %v168
  %230 = vmatpush1.bf16.msra.mxu0 %v167
  %231 = vmatprep.subr.bf16.mxu0 %v172
  %232 = vmatpush1.bf16.msra.mxu0 %v171
  %233 = vmatprep.subr.bf16.mxu0 %v176
  %234 = vmatpush1.bf16.msra.mxu0 %v175
  %235 = vmatprep.subr.bf16.mxu0 %v180
  %236 = vmatpush1.bf16.msra.mxu0 %v179
  %237 = vmatprep.subr.bf16.mxu0 %v184
  %238 = vmatpush1.bf16.msra.mxu0 %v183
  %239 = vmatprep.subr.bf16.mxu0 %v188
  %240 = vmatpush1.bf16.msra.mxu0 %v187
  %241 = vmatprep.subr.bf16.mxu0 %v192
  %242 = vmatpush1.bf16.msra.mxu0 %v191
  %243 = vmatprep.subr.bf16.mxu0 0
  %244 = vmatpush1.bf16.msra.mxu0 0
  %245 = vmatprep.subr.bf16.mxu0 0
  %246 = vmatpush1.bf16.msra.mxu0 0
  %247 = vmatprep.subr.bf16.mxu0 0
  %248 = vmatpush1.bf16.msra.mxu0 0
  %249 = vmatprep.subr.bf16.mxu0 0
  %250 = vmatpush1.bf16.msra.mxu0 0
  %251 = vmatprep.subr.bf16.mxu0 0
  %252 = vmatpush1.bf16.msra.mxu0 0
  %253 = vmatprep.subr.bf16.mxu0 0
  %254 = vmatpush1.bf16.msra.mxu0 0
  %255 = vmatprep.subr.bf16.mxu0 0
  %256 = vmatpush1.bf16.msra.mxu0 0
  %257 = vmatprep.subr.bf16.mxu0 0
  %258 = vmatpush1.bf16.msra.mxu0 0
  %259 = vmatprep.mubr.bf16.mxu0 0
  %260 = vmatmul.mubr.bf16.gmra.mrb[0].mxu0 %v65
  %v261 = vpop.f32.mrb[0].mxu0
  %v262 = vadd.f32 0.0, %v261
  %v263 = vpop.f32.mrb[0].mxu0
  %v264 = vadd.f32 0.0, %v263
  %v265 = vpop.f32.mrb[0].mxu0
  %v266 = vadd.f32 0.0, %v265
  %v267 = vpop.f32.mrb[0].mxu0
  %v268 = vadd.f32 0.0, %v267
  %269 = vdwg.mxu0
  %270 = vmatprep.subr.bf16.mxu0 %v166
  %271 = vmatpush1.bf16.msra.mxu0 %v165
  %272 = vmatprep.subr.bf16.mxu0 %v170
  %273 = vmatpush1.bf16.msra.mxu0 %v169
  %274 = vmatprep.subr.bf16.mxu0 %v174
  %275 = vmatpush1.bf16.msra.mxu0 %v173
  %276 = vmatprep.subr.bf16.mxu0 %v178
  %277 = vmatpush1.bf16.msra.mxu0 %v177
  %278 = vmatprep.subr.bf16.mxu0 %v182
  %279 = vmatpush1.bf16.msra.mxu0 %v181
  %280 = vmatprep.subr.bf16.mxu0 %v186
  %281 = vmatpush1.bf16.msra.mxu0 %v185
  %282 = vmatprep.subr.bf16.mxu0 %v190
  %283 = vmatpush1.bf16.msra.mxu0 %v189
  %284 = vmatprep.subr.bf16.mxu0 %v194
  %285 = vmatpush1.bf16.msra.mxu0 %v193
  %286 = vmatprep.subr.bf16.mxu0 0
  %287 = vmatpush1.bf16.msra.mxu0 0
  %288 = vmatprep.subr.bf16.mxu0 0
  %289 = vmatpush1.bf16.msra.mxu0 0
  %290 = vmatprep.subr.bf16.mxu0 0
  %291 = vmatpush1.bf16.msra.mxu0 0
  %292 = vmatprep.subr.bf16.mxu0 0
  %293 = vmatpush1.bf16.msra.mxu0 0
  %294 = vmatprep.subr.bf16.mxu0 0
  %295 = vmatpush1.bf16.msra.mxu0 0
  %296 = vmatprep.subr.bf16.mxu0 0
  %297 = vmatpush1.bf16.msra.mxu0 0
  %298 = vmatprep.subr.bf16.mxu0 0
  %299 = vmatpush1.bf16.msra.mxu0 0
  %300 = vmatprep.subr.bf16.mxu0 0
  %301 = vmatpush1.bf16.msra.mxu0 0
  %302 = vmatprep.mubr.bf16.mxu0 0
  %303 = vmatmul.mubr.bf16.gmra.mrb[0].mxu0 %v65
  %v304 = vpop.f32.mrb[0].mxu0
  %v305 = vadd.f32 0.0, %v304
  %v306 = vpop.f32.mrb[0].mxu0
  %v307 = vadd.f32 0.0, %v306
  %v308 = vpop.f32.mrb[0].mxu0
  %v309 = vadd.f32 0.0, %v308
  %v310 = vpop.f32.mrb[0].mxu0
  %v311 = vadd.f32 0.0, %v310
  %312 = vdwg.mxu0
  %s313 = smul.u32 0, 512
  %s314 = sshra.s32 %s313, 7
  %s315 = sand.u32 %s313, 127
  %s316 = smul.addr %s314, 8
  %s317 = scalar_lea.vmem [#allocation2], %s316
  %318 = vst [vmem:[%s317] sm:$0xff] %v262
  %319 = vst [vmem:[%s317 + $0x8] sm:$0xff] %v264
  %320 = vst [vmem:[%s317 + $0x10] sm:$0xff] %v305
  %321 = vst [vmem:[%s317 + $0x18] sm:$0xff] %v307
  %322 = vst [vmem:[%s317 + $0x20] sm:$0xff] %v266
  %323 = vst [vmem:[%s317 + $0x28] sm:$0xff] %v268
  %324 = vst [vmem:[%s317 + $0x30] sm:$0xff] %v309
  %325 = vst [vmem:[%s317 + $0x38] sm:$0xff] %v311
  %v326 = vadd.f32 %v262, %v264
  %v327 = vadd.f32 %v326, %v305
  %v328 = vadd.f32 %v327, %v307
  %329 = vadd.xlane.f32.xlu0 %v328
  %v330 = vpop.xlane.xlu0 %329
  %v331 = vadd.f32 %v266, %v268
  %v332 = vadd.f32 %v331, %v309
  %v333 = vadd.f32 %v332, %v311
  %334 = vadd.xlane.f32.xlu0 %v333
  %v335 = vpop.xlane.xlu0 %334
  %v336 = vadd.f32 %v330, 0.0
  %v337 = vadd.f32 %v335, 0.0
  %v338 = vmul.f32 %v262, %v262
  %v339 = vmul.f32 %v264, %v264
  %v340 = vmul.f32 %v305, %v305
  %v341 = vmul.f32 %v307, %v307
  %v342 = vmul.f32 %v266, %v266
  %v343 = vmul.f32 %v268, %v268
  %v344 = vmul.f32 %v309, %v309
  %v345 = vmul.f32 %v311, %v311
  %v346 = vadd.f32 %v338, %v339
  %v347 = vadd.f32 %v346, %v340
  %v348 = vadd.f32 %v347, %v341
  %349 = vadd.xlane.f32.xlu0 %v348
  %v350 = vpop.xlane.xlu0 %349
  %v351 = vadd.f32 %v342, %v343
  %v352 = vadd.f32 %v351, %v344
  %v353 = vadd.f32 %v352, %v345
  %354 = vadd.xlane.f32.xlu0 %v353
  %v355 = vpop.xlane.xlu0 %354
  %v356 = vadd.f32 %v350, 0.0
  %v357 = vadd.f32 %v355, 0.0
  %v358 = vld [vmem:[#allocation3] sm:$0xff]
  %v359 = vld [vmem:[#allocation3 + $0x8] sm:$0xff]
  %v360 = vadd.f32 %v358, %v336
  %v361 = vadd.f32 %v359, %v337
  %vm362 = vcmask 7168
  %363 = vst.msk [vmem:[#allocation3] sm:$0xff] %vm362, %v360
  %364 = vst.msk [vmem:[#allocation3 + $0x8] sm:$0xff] %vm362, %v361
  %v365 = vld [vmem:[#allocation4] sm:$0xff]
  %v366 = vld [vmem:[#allocation4 + $0x8] sm:$0xff]
  %v367 = vadd.f32 %v365, %v356
  %v368 = vadd.f32 %v366, %v357
  %369 = vst.msk [vmem:[#allocation4] sm:$0xff] %vm362, %v367
  %370 = vst.msk [vmem:[#allocation4 + $0x8] sm:$0xff] %vm362, %v368
  // Predicated region
  $region22: #{discriminator_forward.4} parent=0 // pred_check
    %p371 = pneg %p18
  $region23: #{discriminator_forward.4} parent=0 // pred_check_branch
    %373 = sbr.rel (%p371) target = $region25
  $region24: #{discriminator_forward.4} parent=0 // pred_region
    %v374 = vld [vmem:[#allocation3] sm:$0xff]
    %v375 = vld [vmem:[#allocation3 + $0x8] sm:$0xff]
    %v376 = vmul.f32 %v374, 0.001953125
    %v377 = vmul.f32 %v375, 0.001953125
    %v378 = vld [vmem:[#allocation4] sm:$0xff]
    %v379 = vld [vmem:[#allocation4 + $0x8] sm:$0xff]
    %v380 = vmul.f32 %v378, 0.001953125
    %v381 = vmul.f32 %v379, 0.001953125
    %v382 = vmul.f32 %v376, %v376
    %v383 = vmul.f32 %v377, %v377
    %v384 = vsub.f32 %v380, %v382
    %v385 = vsub.f32 %v381, %v383
    %v386 = vmax.f32 %v384, 0.0
    %v387 = vmax.f32 %v385, 0.0
    %v388 = vld [vmem:[%s2] sm:$0xff]
    %v389 = vld [vmem:[%s2 + $0x8] sm:$0xff]
    %v390 = vadd.f32 %v386, 1e-05
    %v391 = vadd.f32 %v387, 1e-05
    %v392 = vrsqrt.pop %v390
    %v393 = vrsqrt.pop %v391
    %v394 = vmul.f32 %v388, %v392
    %v395 = vmul.f32 %v389, %v393
    %v396 = vld [vmem:[%s3] sm:$0xff]
    %v397 = vld [vmem:[%s3 + $0x8] sm:$0xff]
    %v398 = vmul.f32 %v376, %v394
    %v399 = vmul.f32 %v377, %v395
    %v400 = vsub.f32 %v396, %v398
    %v401 = vsub.f32 %v397, %v399
    %v402 = vld [vmem:[#allocation2] sm:$0xff]
    %v403 = vld [vmem:[#allocation2 + $0x8] sm:$0xff]
    %v404 = vld [vmem:[#allocation2 + $0x10] sm:$0xff]
    %v405 = vld [vmem:[#allocation2 + $0x18] sm:$0xff]
    %v406 = vld [vmem:[#allocation2 + $0x20] sm:$0xff]
    %v407 = vld [vmem:[#allocation2 + $0x28] sm:$0xff]
    %v408 = vld [vmem:[#allocation2 + $0x30] sm:$0xff]
    %v409 = vld [vmem:[#allocation2 + $0x38] sm:$0xff]
    %411 = vset.pattern.permute.xlu0 0
    %412 = vperm.xlu0 %411, %v394
    %v413 = vpop.permute.xlu0 %412
    %416 = vset.pattern.permute.xlu0 0
    %417 = vperm.xlu0 %416, %v395
    %v418 = vpop.permute.xlu0 %417
    %v420 = vmul.f32 %v402, %v413
    %v421 = vmul.f32 %v403, %v413
    %v422 = vmul.f32 %v404, %v413
    %v423 = vmul.f32 %v405, %v413
    %v424 = vmul.f32 %v406, %v418
    %v425 = vmul.f32 %v407, %v418
    %v426 = vmul.f32 %v408, %v418
    %v427 = vmul.f32 %v409, %v418
    %429 = vset.pattern.permute.xlu0 0
    %430 = vperm.xlu0 %429, %v400
    %v431 = vpop.permute.xlu0 %430
    %434 = vset.pattern.permute.xlu0 0
    %435 = vperm.xlu0 %434, %v401
    %v436 = vpop.permute.xlu0 %435
    %v438 = vadd.f32 %v420, %v431
    %v439 = vadd.f32 %v421, %v431
    %v440 = vadd.f32 %v422, %v431
    %v441 = vadd.f32 %v423, %v431
    %v442 = vadd.f32 %v424, %v436
    %v443 = vadd.f32 %v425, %v436
    %v444 = vadd.f32 %v426, %v436
    %v445 = vadd.f32 %v427, %v436
    %vm446 = vcmp.gt.f32.partialorder %v438, 0.0
    %vm447 = vcmp.gt.f32.partialorder %v439, 0.0
    %vm448 = vcmp.gt.f32.partialorder %v440, 0.0
    %vm449 = vcmp.gt.f32.partialorder %v441, 0.0
    %vm450 = vcmp.gt.f32.partialorder %v442, 0.0
    %vm451 = vcmp.gt.f32.partialorder %v443, 0.0
    %vm452 = vcmp.gt.f32.partialorder %v444, 0.0
    %vm453 = vcmp.gt.f32.partialorder %v445, 0.0
    %v454 = vmul.f32 %v438, 0.2
    %v455 = vmul.f32 %v439, 0.2
    %v456 = vmul.f32 %v440, 0.2
    %v457 = vmul.f32 %v441, 0.2
    %v458 = vmul.f32 %v442, 0.2
    %v459 = vmul.f32 %v443, 0.2
    %v460 = vmul.f32 %v444, 0.2
    %v461 = vmul.f32 %v445, 0.2
    %v462 = vsel %vm446, %v438, %v454
    %v463 = vsel %vm447, %v439, %v455
    %v464 = vsel %vm448, %v440, %v456
    %v465 = vsel %vm449, %v441, %v457
    %v466 = vsel %vm450, %v442, %v458
    %v467 = vsel %vm451, %v443, %v459
    %v468 = vsel %vm452, %v444, %v460
    %v469 = vsel %vm453, %v445, %v461
    %v470 = vpack.c.bf16 %v466, %v462
    %v471 = vpack.c.bf16 %v467, %v463
    %v472 = vpack.c.bf16 %v468, %v464
    %v473 = vpack.c.bf16 %v469, %v465
    %v478 = vunpack.c.l.b16 %v470
    %v479 = vunpack.c.l.b16 %v471
    %v480 = vunpack.c.l.b16 %v472
    %v481 = vunpack.c.l.b16 %v473
    %v482 = vunpack.c.h.b16 %v470
    %v483 = vunpack.c.h.b16 %v471
    %v484 = vunpack.c.h.b16 %v472
    %v485 = vunpack.c.h.b16 %v473
    %v486 = vpack.c.b16 %v479, %v478
    %v487 = vpack.c.b16 %v481, %v480
    %v488 = vpack.c.b16 %v483, %v482
    %v489 = vpack.c.b16 %v485, %v484
    %494 = vst [vmem:[%s4] sm:$0xff] %v486
    %495 = vst [vmem:[%s4 + $0x8] sm:$0xff] %v487
    %496 = vst [vmem:[%s4 + $0x10] sm:$0xff] %v488
    %497 = vst [vmem:[%s4 + $0x18] sm:$0xff] %v489
  $region25: #{discriminator_forward.4} parent=0 // pred_fallthru
    _
  // Predicated region
  $region26: #{discriminator_forward.4} parent=0 // pred_check
    _
  $region27: #{discriminator_forward.4} parent=0 // pred_check_branch
    %499 = sbr.rel (0) target = $region29
  $region28: #{discriminator_forward.4} parent=0 // pred_region
    _
  $region29: #{discriminator_forward.4} parent=0 // pred_fallthru
    _
  // Predicated region
  $region30: #{discriminator_forward.4} parent=0 // pred_check
    _
  $region31: #{discriminator_forward.4} parent=0 // pred_check_branch
    %501 = sbr.rel (0) target = $region33
  $region32: #{discriminator_forward.4} parent=0 // pred_region
    _
  $region33: #{discriminator_forward.4} parent=0 // pred_fallthru
    _

// kernel: discriminator_forward.5
$region0: #{discriminator_forward.5}
  #allocation0 [shape = 'u32[]', space=smem, size = 0x4, offset = 0x4, fixed_abs, tag = 'smem constant byte address 0x4 - core index']
  #allocation1 [shape = 'u32[144,128]{1,0:T(1,128)}', space=vmem, size = 0x12000, scoped, tag = 'internal scratch']
  #allocation2 [shape = 'f32[32,128]{1,0:T(8,128)}', space=vmem, size = 0x4000, scoped, tag = 'scratch operand']
  #allocation3 [shape = 'f32[32,1]{1,0:T(8,128)}', space=vmem, size = 0x4000, scoped, tag = 'scratch operand']
  #allocation4 [shape = 'f32[32,1]{1,0:T(8,128)}', space=vmem, size = 0x4000, scoped, tag = 'scratch operand']
  %s0 = inlined_call_operand.vmem [shape: bf16[32,256], index: 0, kind: input, shape index: {}]
  %s1 = inlined_call_operand.vmem [shape: bf16[256,128], index: 1, kind: input, shape index: {}]
  %s2 = inlined_call_operand.vmem [shape: f32[32,1], index: 2, kind: input, shape index: {}]
  %s3 = inlined_call_operand.vmem [shape: f32[32,1], index: 3, kind: input, shape index: {}]
  %s4 = inlined_call_operand.vmem [shape: bf16[32,128], index: 4, kind: output, shape index: {}]
  %s5 = sld [smem:[#allocation0]]
  $region34: #{discriminator_forward.5} parent=0
    _
  %s7 = ssub.s32 1, %s5
  %s8 = scalar_select 0, %s7, %s5
  // Predicated region
  $region2: #{discriminator_forward.5} parent=0 // pred_check
    _
  $region3: #{discriminator_forward.5} parent=0 // pred_check_branch
    %10 = sbr.rel (0) target = $region5
  $region4: #{discriminator_forward.5} parent=0 // pred_region
    _
  $region5: #{discriminator_forward.5} parent=0 // pred_fallthru
    _
  // Predicated region
  $region6: #{discriminator_forward.5} parent=0 // pred_check
    _
  $region7: #{discriminator_forward.5} parent=0 // pred_check_branch
    %12 = sbr.rel (0) target = $region9
  $region8: #{discriminator_forward.5} parent=0 // pred_region
    _
  $region9: #{discriminator_forward.5} parent=0 // pred_fallthru
    _
  // Predicated region
  $region10: #{discriminator_forward.5} parent=0 // pred_check
    _
  $region11: #{discriminator_forward.5} parent=0 // pred_check_branch
    %14 = sbr.rel (0) target = $region13
  $region12: #{discriminator_forward.5} parent=0 // pred_region
    _
  $region13: #{discriminator_forward.5} parent=0 // pred_fallthru
    _
  // Predicated region
  $region14: #{discriminator_forward.5} parent=0 // pred_check
    _
  $region15: #{discriminator_forward.5} parent=0 // pred_check_branch
    %16 = sbr.rel (0) target = $region17
  $region16: #{discriminator_forward.5} parent=0 // pred_region
    _
  $region17: #{discriminator_forward.5} parent=0 // pred_fallthru
    _
  %p18 = scmp.eq.s32.totalorder 0, 0
  // Predicated region
  $region18: #{discriminator_forward.5} parent=0 // pred_check
    %p19 = pneg %p18
  $region19: #{discriminator_forward.5} parent=0 // pred_check_branch
    %21 = sbr.rel (%p19) target = $region21
  $region20: #{discriminator_forward.5} parent=0 // pred_region
    %vm22 = vcmask 7168
    %23 = vst.msk [vmem:[#allocation3] sm:$0xff] %vm22, 0.0
    %24 = vst.msk [vmem:[#allocation3 + $0x8] sm:$0xff] %vm22, 0.0
    %25 = vst.msk [vmem:[#allocation3 + $0x10] sm:$0xff] %vm22, 0.0
    %26 = vst.msk [vmem:[#allocation3 + $0x18] sm:$0xff] %vm22, 0.0
    %27 = vst.msk [vmem:[#allocation4] sm:$0xff] %vm22, 0.0
    %28 = vst.msk [vmem:[#allocation4 + $0x8] sm:$0xff] %vm22, 0.0
    %29 = vst.msk [vmem:[#allocation4 + $0x10] sm:$0xff] %vm22, 0.0
    %30 = vst.msk [vmem:[#allocation4 + $0x18] sm:$0xff] %vm22, 0.0
  $region21: #{discriminator_forward.5} parent=0 // pred_fallthru
    _
  %v31 = vld [vmem:[%s0] sm:$0xff]
  %v32 = vld [vmem:[%s0 + $0x8] sm:$0xff]
  %v33 = vld [vmem:[%s0 + $0x10] sm:$0xff]
  %v34 = vld [vmem:[%s0 + $0x18] sm:$0xff]
  %v35 = vld [vmem:[%s1] sm:$0xf]
  %v36 = vld [vmem:[%s1 + $0x4] sm:$0xf]
  %v37 = vld [vmem:[%s1 + $0x8] sm:$0xf]
  %v38 = vld [vmem:[%s1 + $0xc] sm:$0xf]
  %v39 = vld [vmem:[%s1 + $0x10] sm:$0xf]
  %v40 = vld [vmem:[%s1 + $0x14] sm:$0xf]
  %v41 = vld [vmem:[%s1 + $0x18] sm:$0xf]
  %v42 = vld [vmem:[%s1 + $0x1c] sm:$0xf]
  %v43 = vld [vmem:[%s1 + $0x20] sm:$0xf]
  %v44 = vld [vmem:[%s1 + $0x24] sm:$0xf]
  %v45 = vld [vmem:[%s1 + $0x28] sm:$0xf]
  %v46 = vld [vmem:[%s1 + $0x2c] sm:$0xf]
  %v47 = vld [vmem:[%s1 + $0x30] sm:$0xf]
  %v48 = vld [vmem:[%s1 + $0x34] sm:$0xf]
  %v49 = vld [vmem:[%s1 + $0x38] sm:$0xf]
  %v50 = vld [vmem:[%s1 + $0x3c] sm:$0xf]
  %v51 = vld [vmem:[%s1 + $0x40] sm:$0xf]
  %v52 = vld [vmem:[%s1 + $0x44] sm:$0xf]
  %v53 = vld [vmem:[%s1 + $0x48] sm:$0xf]
  %v54 = vld [vmem:[%s1 + $0x4c] sm:$0xf]
  %v55 = vld [vmem:[%s1 + $0x50] sm:$0xf]
  %v56 = vld [vmem:[%s1 + $0x54] sm:$0xf]
  %v57 = vld [vmem:[%s1 + $0x58] sm:$0xf]
  %v58 = vld [vmem:[%s1 + $0x5c] sm:$0xf]
  %v59 = vld [vmem:[%s1 + $0x60] sm:$0xf]
  %v60 = vld [vmem:[%s1 + $0x64] sm:$0xf]
  %v61 = vld [vmem:[%s1 + $0x68] sm:$0xf]
  %v62 = vld [vmem:[%s1 + $0x6c] sm:$0xf]
  %v63 = vld [vmem:[%s1 + $0x70] sm:$0xf]
  %v64 = vld [vmem:[%s1 + $0x74] sm:$0xf]
  %v65 = vld [vmem:[%s1 + $0x78] sm:$0xf]
  %v66 = vld [vmem:[%s1 + $0x7c] sm:$0xf]
  %v71 = vunpack.c.l.b16 %v31
  %v72 = vunpack.c.h.b16 %v31
  %v73 = vunpack.c.l.b16 %v32
  %v74 = vunpack.c.h.b16 %v32
  %v75 = vunpack.c.l.b16 %v33
  %v76 = vunpack.c.h.b16 %v33
  %v77 = vunpack.c.l.b16 %v34
  %v78 = vunpack.c.h.b16 %v34
  %v79 = vpack.c.b16 %v73, %v71
  %v80 = vpack.c.b16 %v74, %v72
  %v81 = vpack.c.b16 %v77, %v75
  %v82 = vpack.c.b16 %v78, %v76
  %v119 = vunpack.c.l.b16 %v35
  %v120 = vunpack.c.l.b16 %v36
  %v121 = vunpack.c.l.b16 %v37
  %v122 = vunpack.c.l.b16 %v38
  %v123 = vunpack.c.l.b16 %v39
  %v124 = vunpack.c.l.b16 %v40
  %v125 = vunpack.c.l.b16 %v41
  %v126 = vunpack.c.l.b16 %v42
  %v127 = vunpack.c.l.b16 %v43
  %v128 = vunpack.c.l.b16 %v44
  %v129 = vunpack.c.l.b16 %v45
  %v130 = vunpack.c.l.b16 %v46
  %v131 = vunpack.c.l.b16 %v47
  %v132 = vunpack.c.l.b16 %v48
  %v133 = vunpack.c.l.b16 %v49
  %v134 = vunpack.c.l.b16 %v50
  %v135 = vunpack.c.l.b16 %v51
  %v136 = vunpack.c.l.b16 %v52
  %v137 = vunpack.c.l.b16 %v53
  %v138 = vunpack.c.l.b16 %v54
  %v139 = vunpack.c.l.b16 %v55
  %v140 = vunpack.c.l.b16 %v56
  %v141 = vunpack.c.l.b16 %v57
  %v142 = vunpack.c.l.b16 %v58
  %v143 = vunpack.c.l.b16 %v59
  %v144 = vunpack.c.l.b16 %v60
  %v145 = vunpack.c.l.b16 %v61
  %v146 = vunpack.c.l.b16 %v62
  %v147 = vunpack.c.l.b16 %v63
  %v148 = vunpack.c.l.b16 %v64
  %v149 = vunpack.c.l.b16 %v65
  %v150 = vunpack.c.l.b16 %v66
  %v151 = vpack.c.b16 %v120, %v119
  %v152 = vpack.c.b16 %v122, %v121
  %v153 = vpack.c.b16 %v124, %v123
  %v154 = vpack.c.b16 %v126, %v125
  %v155 = vpack.c.b16 %v128, %v127
  %v156 = vpack.c.b16 %v130, %v129
  %v157 = vpack.c.b16 %v132, %v131
  %v158 = vpack.c.b16 %v134, %v133
  %v159 = vpack.c.b16 %v136, %v135
  %v160 = vpack.c.b16 %v138, %v137
  %v161 = vpack.c.b16 %v140, %v139
  %v162 = vpack.c.b16 %v142, %v141
  %v163 = vpack.c.b16 %v144, %v143
  %v164 = vpack.c.b16 %v146, %v145
  %v165 = vpack.c.b16 %v148, %v147
  %v166 = vpack.c.b16 %v150, %v149
  %183 = vmatprep.subr.bf16.mxu0 0
  %184 = vmatpush1.bf16.msra.mxu0 %v151
  %185 = vmatprep.subr.bf16.mxu0 0
  %186 = vmatpush1.bf16.msra.mxu0 %v152
  %187 = vmatprep.subr.bf16.mxu0 0
  %188 = vmatpush1.bf16.msra.mxu0 %v153
  %189 = vmatprep.subr.bf16.mxu0 0
  %190 = vmatpush1.bf16.msra.mxu0 %v154
  %191 = vmatprep.subr.bf16.mxu0 0
  %192 = vmatpush1.bf16.msra.mxu0 %v155
  %193 = vmatprep.subr.bf16.mxu0 0
  %194 = vmatpush1.bf16.msra.mxu0 %v156
  %195 = vmatprep.subr.bf16.mxu0 0
  %196 = vmatpush1.bf16.msra.mxu0 %v157
  %197 = vmatprep.subr.bf16.mxu0 0
  %198 = vmatpush1.bf16.msra.mxu0 %v158
  %199 = vmatprep.subr.bf16.mxu0 0
  %200 = vmatpush1.bf16.msra.mxu0 %v159
  %201 = vmatprep.subr.bf16.mxu0 0
  %202 = vmatpush1.bf16.msra.mxu0 %v160
  %203 = vmatprep.subr.bf16.mxu0 0
  %204 = vmatpush1.bf16.msra.mxu0 %v161
  %205 = vmatprep.subr.bf16.mxu0 0
  %206 = vmatpush1.bf16.msra.mxu0 %v162
  %207 = vmatprep.subr.bf16.mxu0 0
  %208 = vmatpush1.bf16.msra.mxu0 %v163
  %209 = vmatprep.subr.bf16.mxu0 0
  %210 = vmatpush1.bf16.msra.mxu0 %v164
  %211 = vmatprep.subr.bf16.mxu0 0
  %212 = vmatpush1.bf16.msra.mxu0 %v165
  %213 = vmatprep.subr.bf16.mxu0 0
  %214 = vmatpush1.bf16.msra.mxu0 %v166
  %215 = vmatprep.mubr.bf16.mxu0 %v80
  %216 = vmatmul.mubr.bf16.gmra.mrb[0].mxu0 %v79
  %v217 = vpop.f32.mrb[0].mxu0
  %v218 = vadd.f32 0.0, %v217
  %v219 = vpop.f32.mrb[0].mxu0
  %v220 = vpop.f32.mrb[0].mxu0
  %v221 = vadd.f32 0.0, %v220
  %v222 = vpop.f32.mrb[0].mxu0
  %223 = vmatprep.mubr.bf16.mxu0 %v82
  %224 = vmatmul.mubr.bf16.gmra.mrb[0].mxu0 %v81
  %v225 = vpop.f32.mrb[0].mxu0
  %v226 = vadd.f32 0.0, %v225
  %v227 = vpop.f32.mrb[0].mxu0
  %v228 = vpop.f32.mrb[0].mxu0
  %v229 = vadd.f32 0.0, %v228
  %v230 = vpop.f32.mrb[0].mxu0
  %231 = vdwg.mxu0
  %s232 = smul.u32 0, 128
  %s233 = sshra.s32 %s232, 7
  %s234 = sand.u32 %s232, 127
  %s235 = scalar_lea.vmem [#allocation2], %s233
  %236 = vst [vmem:[%s235] sm:$0xff] %v218
  %237 = vst [vmem:[%s235 + $0x8] sm:$0xff] %v221
  %238 = vst [vmem:[%s235 + $0x10] sm:$0xff] %v226
  %239 = vst [vmem:[%s235 + $0x18] sm:$0xff] %v229
  %240 = vadd.xlane.f32.xlu0 %v218
  %v241 = vpop.xlane.xlu0 %240
  %242 = vadd.xlane.f32.xlu0 %v221
  %v243 = vpop.xlane.xlu0 %242
  %244 = vadd.xlane.f32.xlu0 %v226
  %v245 = vpop.xlane.xlu0 %244
  %246 = vadd.xlane.f32.xlu0 %v229
  %v247 = vpop.xlane.xlu0 %246
  %v248 = vadd.f32 %v241, 0.0
  %v249 = vadd.f32 %v243, 0.0
  %v250 = vadd.f32 %v245, 0.0
  %v251 = vadd.f32 %v247, 0.0
  %v252 = vmul.f32 %v218, %v218
  %v253 = vmul.f32 %v221, %v221
  %v254 = vmul.f32 %v226, %v226
  %v255 = vmul.f32 %v229, %v229
  %256 = vadd.xlane.f32.xlu0 %v252
  %v257 = vpop.xlane.xlu0 %256
  %258 = vadd.xlane.f32.xlu0 %v253
  %v259 = vpop.xlane.xlu0 %258
  %260 = vadd.xlane.f32.xlu0 %v254
  %v261 = vpop.xlane.xlu0 %260
  %262 = vadd.xlane.f32.xlu0 %v255
  %v263 = vpop.xlane.xlu0 %262
  %v264 = vadd.f32 %v257, 0.0
  %v265 = vadd.f32 %v259, 0.0
  %v266 = vadd.f32 %v261, 0.0
  %v267 = vadd.f32 %v263, 0.0
  %v268 = vld [vmem:[#allocation3] sm:$0xff]
  %v269 = vld [vmem:[#allocation3 + $0x8] sm:$0xff]
  %v270 = vld [vmem:[#allocation3 + $0x10] sm:$0xff]
  %v271 = vld [vmem:[#allocation3 + $0x18] sm:$0xff]
  %v272 = vadd.f32 %v268, %v248
  %v273 = vadd.f32 %v269, %v249
  %v274 = vadd.f32 %v270, %v250
  %v275 = vadd.f32 %v271, %v251
  %vm276 = vcmask 7168
  %277 = vst.msk [vmem:[#allocation3] sm:$0xff] %vm276, %v272
  %278 = vst.msk [vmem:[#allocation3 + $0x8] sm:$0xff] %vm276, %v273
  %279 = vst.msk [vmem:[#allocation3 + $0x10] sm:$0xff] %vm276, %v274
  %280 = vst.msk [vmem:[#allocation3 + $0x18] sm:$0xff] %vm276, %v275
  %v281 = vld [vmem:[#allocation4] sm:$0xff]
  %v282 = vld [vmem:[#allocation4 + $0x8] sm:$0xff]
  %v283 = vld [vmem:[#allocation4 + $0x10] sm:$0xff]
  %v284 = vld [vmem:[#allocation4 + $0x18] sm:$0xff]
  %v285 = vadd.f32 %v281, %v264
  %v286 = vadd.f32 %v282, %v265
  %v287 = vadd.f32 %v283, %v266
  %v288 = vadd.f32 %v284, %v267
  %289 = vst.msk [vmem:[#allocation4] sm:$0xff] %vm276, %v285
  %290 = vst.msk [vmem:[#allocation4 + $0x8] sm:$0xff] %vm276, %v286
  %291 = vst.msk [vmem:[#allocation4 + $0x10] sm:$0xff] %vm276, %v287
  %292 = vst.msk [vmem:[#allocation4 + $0x18] sm:$0xff] %vm276, %v288
  // Predicated region
  $region22: #{discriminator_forward.5} parent=0 // pred_check
    %p293 = pneg %p18
  $region23: #{discriminator_forward.5} parent=0 // pred_check_branch
    %295 = sbr.rel (%p293) target = $region25
  $region24: #{discriminator_forward.5} parent=0 // pred_region
    %v296 = vld [vmem:[#allocation3] sm:$0xff]
    %v297 = vld [vmem:[#allocation3 + $0x8] sm:$0xff]
    %v298 = vld [vmem:[#allocation3 + $0x10] sm:$0xff]
    %v299 = vld [vmem:[#allocation3 + $0x18] sm:$0xff]
    %v300 = vmul.f32 %v296, 0.0078125
    %v301 = vmul.f32 %v297, 0.0078125
    %v302 = vmul.f32 %v298, 0.0078125
    %v303 = vmul.f32 %v299, 0.0078125
    %v304 = vld [vmem:[#allocation4] sm:$0xff]
    %v305 = vld [vmem:[#allocation4 + $0x8] sm:$0xff]
    %v306 = vld [vmem:[#allocation4 + $0x10] sm:$0xff]
    %v307 = vld [vmem:[#allocation4 + $0x18] sm:$0xff]
    %v308 = vmul.f32 %v304, 0.0078125
    %v309 = vmul.f32 %v305, 0.0078125
    %v310 = vmul.f32 %v306, 0.0078125
    %v311 = vmul.f32 %v307, 0.0078125
    %v312 = vmul.f32 %v300, %v300
    %v313 = vmul.f32 %v301, %v301
    %v314 = vmul.f32 %v302, %v302
    %v315 = vmul.f32 %v303, %v303
    %v316 = vsub.f32 %v308, %v312
    %v317 = vsub.f32 %v309, %v313
    %v318 = vsub.f32 %v310, %v314
    %v319 = vsub.f32 %v311, %v315
    %v320 = vmax.f32 %v316, 0.0
    %v321 = vmax.f32 %v317, 0.0
    %v322 = vmax.f32 %v318, 0.0
    %v323 = vmax.f32 %v319, 0.0
    %v324 = vld [vmem:[%s2] sm:$0xff]
    %v325 = vld [vmem:[%s2 + $0x8] sm:$0xff]
    %v326 = vld [vmem:[%s2 + $0x10] sm:$0xff]
    %v327 = vld [vmem:[%s2 + $0x18] sm:$0xff]
    %v328 = vadd.f32 %v320, 1e-05
    %v329 = vadd.f32 %v321, 1e-05
    %v330 = vadd.f32 %v322, 1e-05
    %v331 = vadd.f32 %v323, 1e-05
    %v332 = vrsqrt.pop %v328
    %v333 = vrsqrt.pop %v329
    %v334 = vrsqrt.pop %v330
    %v335 = vrsqrt.pop %v331
    %v336 = vmul.f32 %v324, %v332
    %v337 = vmul.f32 %v325, %v333
    %v338 = vmul.f32 %v326, %v334
    %v339 = vmul.f32 %v327, %v335
    %v340 = vld [vmem:[%s3] sm:$0xff]
    %v341 = vld [vmem:[%s3 + $0x8] sm:$0xff]
    %v342 = vld [vmem:[%s3 + $0x10] sm:$0xff]
    %v343 = vld [vmem:[%s3 + $0x18] sm:$0xff]
    %v344 = vmul.f32 %v300, %v336
    %v345 = vmul.f32 %v301, %v337
    %v346 = vmul.f32 %v302, %v338
    %v347 = vmul.f32 %v303, %v339
    %v348 = vsub.f32 %v340, %v344
    %v349 = vsub.f32 %v341, %v345
    %v350 = vsub.f32 %v342, %v346
    %v351 = vsub.f32 %v343, %v347
    %v352 = vld [vmem:[#allocation2] sm:$0xff]
    %v353 = vld [vmem:[#allocation2 + $0x8] sm:$0xff]
    %v354 = vld [vmem:[#allocation2 + $0x10] sm:$0xff]
    %v355 = vld [vmem:[#allocation2 + $0x18] sm:$0xff]
    %357 = vset.pattern.permute.xlu0 0
    %358 = vperm.xlu0 %357, %v336
    %v359 = vpop.permute.xlu0 %358
    %362 = vset.pattern.permute.xlu0 0
    %363 = vperm.xlu0 %362, %v337
    %v364 = vpop.permute.xlu0 %363
    %367 = vset.pattern.permute.xlu0 0
    %368 = vperm.xlu0 %367, %v338
    %v369 = vpop.permute.xlu0 %368
    %372 = vset.pattern.permute.xlu0 0
    %373 = vperm.xlu0 %372, %v339
    %v374 = vpop.permute.xlu0 %373
    %v376 = vmul.f32 %v352, %v359
    %v377 = vmul.f32 %v353, %v364
    %v378 = vmul.f32 %v354, %v369
    %v379 = vmul.f32 %v355, %v374
    %381 = vset.pattern.permute.xlu0 0
    %382 = vperm.xlu0 %381, %v348
    %v383 = vpop.permute.xlu0 %382
    %386 = vset.pattern.permute.xlu0 0
    %387 = vperm.xlu0 %386, %v349
    %v388 = vpop.permute.xlu0 %387
    %391 = vset.pattern.permute.xlu0 0
    %392 = vperm.xlu0 %391, %v350
    %v393 = vpop.permute.xlu0 %392
    %396 = vset.pattern.permute.xlu0 0
    %397 = vperm.xlu0 %396, %v351
    %v398 = vpop.permute.xlu0 %397
    %v400 = vadd.f32 %v376, %v383
    %v401 = vadd.f32 %v377, %v388
    %v402 = vadd.f32 %v378, %v393
    %v403 = vadd.f32 %v379, %v398
    %vm404 = vcmp.gt.f32.partialorder %v400, 0.0
    %vm405 = vcmp.gt.f32.partialorder %v401, 0.0
    %vm406 = vcmp.gt.f32.partialorder %v402, 0.0
    %vm407 = vcmp.gt.f32.partialorder %v403, 0.0
    %v408 = vmul.f32 %v400, 0.2
    %v409 = vmul.f32 %v401, 0.2
    %v410 = vmul.f32 %v402, 0.2
    %v411 = vmul.f32 %v403, 0.2
    %v412 = vsel %vm404, %v400, %v408
    %v413 = vsel %vm405, %v401, %v409
    %v414 = vsel %vm406, %v402, %v410
    %v415 = vsel %vm407, %v403, %v411
    %v416 = vpack.c.bf16 %v413, %v412
    %v417 = vpack.c.bf16 %v415, %v414
    %v420 = vunpack.c.l.b16 %v416
    %v421 = vunpack.c.h.b16 %v416
    %v422 = vunpack.c.l.b16 %v417
    %v423 = vunpack.c.h.b16 %v417
    %v424 = vpack.c.b16 %v420, %v420
    %v425 = vpack.c.b16 %v421, %v421
    %v426 = vpack.c.b16 %v422, %v422
    %v427 = vpack.c.b16 %v423, %v423
    %432 = vst [vmem:[%s4] sm:$0xf] %v424
    %433 = vst [vmem:[%s4 + $0x4] sm:$0xf] %v425
    %434 = vst [vmem:[%s4 + $0x8] sm:$0xf] %v426
    %435 = vst [vmem:[%s4 + $0xc] sm:$0xf] %v427
  $region25: #{discriminator_forward.5} parent=0 // pred_fallthru
    _
  // Predicated region
  $region26: #{discriminator_forward.5} parent=0 // pred_check
    _
  $region27: #{discriminator_forward.5} parent=0 // pred_check_branch
    %437 = sbr.rel (0) target = $region29
  $region28: #{discriminator_forward.5} parent=0 // pred_region
    _
  $region29: #{discriminator_forward.5} parent=0 // pred_fallthru
    _
  // Predicated region
  $region30: #{discriminator_forward.5} parent=0 // pred_check
    _
  $region31: #{discriminator_forward.5} parent=0 // pred_check_branch
    %439 = sbr.rel (0) target = $region33
  $region32: #{discriminator_forward.5} parent=0 // pred_region
    _
  $region33: #{discriminator_forward.5} parent=0 // pred_fallthru
    _

</llo_original>
